<compile_context>
chip_gen: v6e
topology: v6e:2x2x1
jax: 0.10.0
libtpu: 0.0.40
codegen_flags: <defaults>
</compile_context>

<pallas_src>
import jax
import jax.numpy as jnp
import numpy as np
from jax import lax
from jax.experimental import pallas as pl
from jax.experimental.pallas import tpu as pltpu

HIDDEN = 32               # mlp_layers = [1, 32, 32, 1]
LANES = 512               # element (lane) width of the slab; multiple of 128
_CHUNK_ROWS = 8           # rows of the slab processed per inner-loop step (one f32 sublane group)
_TARGET_BLOCK_ROWS = 256  # rows per grid step (256 * 512 * 4B = 512 KiB of elements)


def _value_mlp_kernel(x_ref, w1_ref, b1_ref, w2_ref, b2_ref, w3_ref, b3_ref, o_ref):
    # Weight slabs are tiny and VMEM-resident; load them once (loop-invariant — the
    # compiler keeps hot ones in vregs and reloads the rest from VMEM as needed).
    w1 = w1_ref[...]          # (H, LANES)  lane-broadcast W1[:, 0]
    b1 = b1_ref[...]          # (H, LANES)
    w2 = w2_ref[...]          # (H, H)      torch (out, in) layout
    b2 = b2_ref[...]          # (H, LANES)
    w3 = w3_ref[...]          # (H, LANES)  lane-broadcast W3[0, :]
    b3 = b3_ref[...]          # (1, LANES)

    block_r = x_ref.shape[0]
    n_chunks = block_r // _CHUNK_ROWS

    def chunk_body(c, carry):
        r0 = pl.multiple_of(c * _CHUNK_ROWS, _CHUNK_ROWS)
        xc = x_ref[pl.ds(r0, _CHUNK_ROWS), :]              # (CHUNK, LANES) dense load

        out_rows = []
        for i in range(_CHUNK_ROWS):                       # static unroll: overlap VPU/MXU/XLU
            xr = xc[i:i + 1, :]                            # (1, LANES)
            # Layer 1 (1 -> H): rank-1, done on the VPU (sublane broadcast of xr).
            h1 = jnp.maximum(xr * w1 + b1, 0.0)            # (H, LANES)
            # Layer 2 (H -> H): the only real matmul; lane axis (N=512) fully dense.
            h2 = jnp.dot(w2, h1, preferred_element_type=jnp.float32)
            h2 = jnp.maximum(h2 + b2, 0.0)                 # (H, LANES)
            # Layer 3 (H -> 1): VPU multiply + sublane reduction (no N=1 MXU op).
            orow = jnp.sum(w3 * h2, axis=0, keepdims=True) + b3   # (1, LANES)
            out_rows.append(orow)

        # Single dense (CHUNK, LANES) store — full 128-lane, unmasked vst.
        o_ref[pl.ds(r0, _CHUNK_ROWS), :] = jnp.concatenate(out_rows, axis=0).astype(o_ref.dtype)
        return carry

    lax.fori_loop(0, n_chunks, chunk_body, 0)


def _choose_block_rows(rows):
    # Big tiles amortize the ~0.35us/step grid overhead, but keep >= 2 grid steps
    # when the input is large enough so v7x's two TensorCores both get work.
    if rows >= 2 * _TARGET_BLOCK_ROWS:
        return _TARGET_BLOCK_ROWS
    half = pl.cdiv(rows, 2)
    return max(_CHUNK_ROWS, pl.cdiv(half, _CHUNK_ROWS) * _CHUNK_ROWS)


def _pack_params(params, lanes):
    """Host-side one-time layout: lane-broadcast vectors to (H, lanes) full blocks."""
    W1, b1, W2, b2, W3, b3 = params
    h = W2.shape[0]
    f32 = jnp.float32
    w1_hl = jnp.broadcast_to(W1.reshape(h, 1).astype(f32), (h, lanes))
    b1_hl = jnp.broadcast_to(b1.reshape(h, 1).astype(f32), (h, lanes))
    b2_hl = jnp.broadcast_to(b2.reshape(h, 1).astype(f32), (h, lanes))
    w3_hl = jnp.broadcast_to(W3.reshape(h, 1).astype(f32), (h, lanes))
    b3_rw = jnp.broadcast_to(b3.reshape(1, 1).astype(f32), (1, lanes))
    return w1_hl, b1_hl, W2.astype(f32), b2_hl, w3_hl, b3_rw


def value_layer_pallas(x, params):
    """Applies the ValueLayer per-element MLP to x (any shape); returns x.squeeze()-like output."""
    orig_shape = x.shape
    flat = x.reshape(-1).astype(jnp.float32)
    n = flat.shape[0]

    rows = max(1, pl.cdiv(n, LANES))
    block_r = _choose_block_rows(rows)
    rows_pad = pl.cdiv(rows, block_r) * block_r
    n_pad = rows_pad * LANES

    # One pad + one reshape to the lane-dense slab (padded tail is discarded later).
    slab = jnp.pad(flat, (0, n_pad - n)).reshape(rows_pad, LANES)
    w1_hl, b1_hl, w2_f, b2_hl, w3_hl, b3_rw = _pack_params(params, LANES)

    grid = (rows_pad // block_r,)

    out = pl.pallas_call(
        _value_mlp_kernel,
        out_shape=jax.ShapeDtypeStruct((rows_pad, LANES), jnp.float32),
        grid=grid,
        in_specs=[
            pl.BlockSpec((block_r, LANES), lambda i: (i, 0)),     # element tile
            pl.BlockSpec((HIDDEN, LANES), lambda i: (0, 0)),      # w1 (lane-broadcast)
            pl.BlockSpec((HIDDEN, LANES), lambda i: (0, 0)),      # b1
            pl.BlockSpec((HIDDEN, HIDDEN), lambda i: (0, 0)),     # W2 (full array block)
            pl.BlockSpec((HIDDEN, LANES), lambda i: (0, 0)),      # b2
            pl.BlockSpec((HIDDEN, LANES), lambda i: (0, 0)),      # w3 (lane-broadcast)
            pl.BlockSpec((1, LANES), lambda i: (0, 0)),           # b3
        ],
        out_specs=pl.BlockSpec((block_r, LANES), lambda i: (i, 0)),
        compiler_params=pltpu.CompilerParams(
            dimension_semantics=("parallel",),
            vmem_limit_bytes=32 * 1024 * 1024,   # actual footprint ~2-3 MiB; safe on v5e/v6e/v7x
        ),
    )(slab, w1_hl, b1_hl, w2_f, b2_hl, w3_hl, b3_rw)

    result = out.reshape(-1)[:n].reshape(orig_shape)
    return jnp.squeeze(result)  # matches torch .squeeze() (drops ALL size-1 dims)


def init_params(key, hidden=HIDDEN):
    """Deterministic nn.Linear-style init (uniform +-1/sqrt(fan_in)), torch (out, in) layout."""
    ks = jax.random.split(key, 6)

    def lin(kw, kb, fan_in, fan_out):
        bound = 1.0 / np.sqrt(fan_in)
        w = jax.random.uniform(kw, (fan_out, fan_in), jnp.float32, -bound, bound)
        b = jax.random.uniform(kb, (fan_out,), jnp.float32, -bound, bound)
        return w, b

    W1, b1 = lin(ks[0], ks[1], 1, hidden)        # Linear(1, H)
    W2, b2 = lin(ks[2], ks[3], hidden, hidden)   # Linear(H, H)
    W3, b3 = lin(ks[4], ks[5], hidden, 1)        # Linear(H, 1)
    return (W1, b1, W2, b2, W3, b3)
    # TODO(synk): the original module optionally loads trilinear_init.pth or fine-tunes
    # these weights toward a trilinear kernel with an Adam loop (init_kernel); that
    # training loop / file load is not a kernel-level op and is intentionally omitted.


def value_layer_ref(x, params):
    """Pure-JAX reference of the torch forward."""
    W1, b1, W2, b2, W3, b3 = params
    h = x[None, ..., None].astype(jnp.float32)            # (1, ..., 1)
    h = jnp.maximum(h @ W1.T + b1, 0.0)
    h = jnp.maximum(h @ W2.T + b2, 0.0)
    h = h @ W3.T + b3
    return jnp.squeeze(h)


if __name__ == "__main__":
    key = jax.random.PRNGKey(0)
    k_param, k_x = jax.random.split(key)
    params = init_params(k_param)

    # Small example input (NCHW-style event tensor of timestamps in [-1, 1]).
    x = jax.random.uniform(k_x, (2, 4, 16, 16), jnp.float32, -1.0, 1.0)

    out = value_layer_pallas(x, params)
    out = jax.block_until_ready(out)

    ref = value_layer_ref(x, params)
    assert out.shape == ref.shape, (out.shape, ref.shape)
    np.testing.assert_allclose(np.asarray(out), np.asarray(ref), rtol=1e-5, atol=1e-5)

    print("KERNEL_OK")
</pallas_src>

<mosaic_0001>
module attributes {stable_mosaic.version = 11 : i64} {
  func.func @_value_mlp_kernel(%arg0: i32, %arg1: memref<8x512xf32, #tpu.memory_space<vmem>>, %arg2: memref<32x512xf32, #tpu.memory_space<vmem>>, %arg3: memref<32x512xf32, #tpu.memory_space<vmem>>, %arg4: memref<32x32xf32, #tpu.memory_space<vmem>>, %arg5: memref<32x512xf32, #tpu.memory_space<vmem>>, %arg6: memref<32x512xf32, #tpu.memory_space<vmem>>, %arg7: memref<1x512xf32, #tpu.memory_space<vmem>>, %arg8: memref<8x512xf32, #tpu.memory_space<vmem>>) attributes {dimension_semantics = [#tpu.dimension_semantics<parallel>], iteration_bounds = array<i64: 1>, scalar_prefetch = 0 : i64, scratch_operands = 0 : i64, tpu.core_type = #tpu.core_type<tc>, window_params = [{transform_indices = @transform_0, window_bounds = array<i64: 8, 512>}, {pipeline_mode = #tpu.pipeline_mode<synchronous>, transform_indices = @transform_1, window_bounds = array<i64: 32, 512>}, {pipeline_mode = #tpu.pipeline_mode<synchronous>, transform_indices = @transform_2, window_bounds = array<i64: 32, 512>}, {pipeline_mode = #tpu.pipeline_mode<synchronous>, transform_indices = @transform_3, window_bounds = array<i64: 32, 32>}, {pipeline_mode = #tpu.pipeline_mode<synchronous>, transform_indices = @transform_4, window_bounds = array<i64: 32, 512>}, {pipeline_mode = #tpu.pipeline_mode<synchronous>, transform_indices = @transform_5, window_bounds = array<i64: 32, 512>}, {pipeline_mode = #tpu.pipeline_mode<synchronous>, transform_indices = @transform_6, window_bounds = array<i64: 1, 512>}, {transform_indices = @transform_7, window_bounds = array<i64: 8, 512>}]} {
    %c0 = arith.constant 0 : index
    %c0_0 = arith.constant 0 : index
    %0 = vector.load %arg2[%c0, %c0_0] : memref<32x512xf32, #tpu.memory_space<vmem>>, vector<32x512xf32>
    %c0_1 = arith.constant 0 : index
    %c0_2 = arith.constant 0 : index
    %1 = vector.load %arg3[%c0_1, %c0_2] : memref<32x512xf32, #tpu.memory_space<vmem>>, vector<32x512xf32>
    %c0_3 = arith.constant 0 : index
    %c0_4 = arith.constant 0 : index
    %2 = vector.load %arg4[%c0_3, %c0_4] : memref<32x32xf32, #tpu.memory_space<vmem>>, vector<32x32xf32>
    %c0_5 = arith.constant 0 : index
    %c0_6 = arith.constant 0 : index
    %3 = vector.load %arg5[%c0_5, %c0_6] : memref<32x512xf32, #tpu.memory_space<vmem>>, vector<32x512xf32>
    %c0_7 = arith.constant 0 : index
    %c0_8 = arith.constant 0 : index
    %4 = vector.load %arg6[%c0_7, %c0_8] : memref<32x512xf32, #tpu.memory_space<vmem>>, vector<32x512xf32>
    %c0_9 = arith.constant 0 : index
    %c0_10 = arith.constant 0 : index
    %5 = vector.load %arg7[%c0_9, %c0_10] : memref<1x512xf32, #tpu.memory_space<vmem>>, vector<1x512xf32>
    %c0_i32 = arith.constant 0 : i32
    %c8_i32 = arith.constant 8 : i32
    %6 = arith.muli %c0_i32, %c8_i32 : i32
    %7 = tpu.assume_multiple %6, 8 : i32
    %8 = arith.index_cast %7 : i32 to index
    %c0_11 = arith.constant 0 : index
    %9 = vector.load %arg1[%8, %c0_11] : memref<8x512xf32, #tpu.memory_space<vmem>>, vector<8x512xf32>
    %10 = vector.extract_strided_slice %9 {offsets = [0, 0], sizes = [1, 512], strides = [1, 1]} : vector<8x512xf32> to vector<1x512xf32>
    %11 = vector.broadcast %10 : vector<1x512xf32> to vector<32x512xf32>
    %12 = arith.mulf %11, %0 : vector<32x512xf32>
    %13 = arith.addf %12, %1 : vector<32x512xf32>
    %cst = arith.constant 0.000000e+00 : f32
    %14 = vector.broadcast %cst : f32 to vector<32x512xf32>
    %15 = arith.maximumf %13, %14 : vector<32x512xf32>
    %cst_12 = arith.constant dense<0.000000e+00> : vector<32x512xf32>
    %16 = tpu.matmul %2, %15, %cst_12 {dimension_numbers = #tpu.dot_dimension_numbers<[1], [0], [0], [1], [0, 0, 1, 1], [], []>} : vector<32x32xf32>, vector<32x512xf32>, vector<32x512xf32> -> vector<32x512xf32>
    %17 = arith.addf %16, %3 : vector<32x512xf32>
    %cst_13 = arith.constant 0.000000e+00 : f32
    %18 = vector.broadcast %cst_13 : f32 to vector<32x512xf32>
    %19 = arith.maximumf %17, %18 : vector<32x512xf32>
    %20 = arith.mulf %4, %19 : vector<32x512xf32>
    %cst_14 = arith.constant dense<0.000000e+00> : vector<512xf32>
    %21 = vector.multi_reduction <add>, %20, %cst_14 [0] : vector<32x512xf32> to vector<512xf32>
    %22 = vector.shape_cast %21 : vector<512xf32> to vector<1x512xf32>
    %23 = arith.addf %22, %5 : vector<1x512xf32>
    %24 = vector.extract_strided_slice %9 {offsets = [1, 0], sizes = [1, 512], strides = [1, 1]} : vector<8x512xf32> to vector<1x512xf32>
    %25 = vector.broadcast %24 : vector<1x512xf32> to vector<32x512xf32>
    %26 = arith.mulf %25, %0 : vector<32x512xf32>
    %27 = arith.addf %26, %1 : vector<32x512xf32>
    %cst_15 = arith.constant 0.000000e+00 : f32
    %28 = vector.broadcast %cst_15 : f32 to vector<32x512xf32>
    %29 = arith.maximumf %27, %28 : vector<32x512xf32>
    %cst_16 = arith.constant dense<0.000000e+00> : vector<32x512xf32>
    %30 = tpu.matmul %2, %29, %cst_16 {dimension_numbers = #tpu.dot_dimension_numbers<[1], [0], [0], [1], [0, 0, 1, 1], [], []>} : vector<32x32xf32>, vector<32x512xf32>, vector<32x512xf32> -> vector<32x512xf32>
    %31 = arith.addf %30, %3 : vector<32x512xf32>
    %cst_17 = arith.constant 0.000000e+00 : f32
    %32 = vector.broadcast %cst_17 : f32 to vector<32x512xf32>
    %33 = arith.maximumf %31, %32 : vector<32x512xf32>
    %34 = arith.mulf %4, %33 : vector<32x512xf32>
    %cst_18 = arith.constant dense<0.000000e+00> : vector<512xf32>
    %35 = vector.multi_reduction <add>, %34, %cst_18 [0] : vector<32x512xf32> to vector<512xf32>
    %36 = vector.shape_cast %35 : vector<512xf32> to vector<1x512xf32>
    %37 = arith.addf %36, %5 : vector<1x512xf32>
    %38 = vector.extract_strided_slice %9 {offsets = [2, 0], sizes = [1, 512], strides = [1, 1]} : vector<8x512xf32> to vector<1x512xf32>
    %39 = vector.broadcast %38 : vector<1x512xf32> to vector<32x512xf32>
    %40 = arith.mulf %39, %0 : vector<32x512xf32>
    %41 = arith.addf %40, %1 : vector<32x512xf32>
    %cst_19 = arith.constant 0.000000e+00 : f32
    %42 = vector.broadcast %cst_19 : f32 to vector<32x512xf32>
    %43 = arith.maximumf %41, %42 : vector<32x512xf32>
    %cst_20 = arith.constant dense<0.000000e+00> : vector<32x512xf32>
    %44 = tpu.matmul %2, %43, %cst_20 {dimension_numbers = #tpu.dot_dimension_numbers<[1], [0], [0], [1], [0, 0, 1, 1], [], []>} : vector<32x32xf32>, vector<32x512xf32>, vector<32x512xf32> -> vector<32x512xf32>
    %45 = arith.addf %44, %3 : vector<32x512xf32>
    %cst_21 = arith.constant 0.000000e+00 : f32
    %46 = vector.broadcast %cst_21 : f32 to vector<32x512xf32>
    %47 = arith.maximumf %45, %46 : vector<32x512xf32>
    %48 = arith.mulf %4, %47 : vector<32x512xf32>
    %cst_22 = arith.constant dense<0.000000e+00> : vector<512xf32>
    %49 = vector.multi_reduction <add>, %48, %cst_22 [0] : vector<32x512xf32> to vector<512xf32>
    %50 = vector.shape_cast %49 : vector<512xf32> to vector<1x512xf32>
    %51 = arith.addf %50, %5 : vector<1x512xf32>
    %52 = vector.extract_strided_slice %9 {offsets = [3, 0], sizes = [1, 512], strides = [1, 1]} : vector<8x512xf32> to vector<1x512xf32>
    %53 = vector.broadcast %52 : vector<1x512xf32> to vector<32x512xf32>
    %54 = arith.mulf %53, %0 : vector<32x512xf32>
    %55 = arith.addf %54, %1 : vector<32x512xf32>
    %cst_23 = arith.constant 0.000000e+00 : f32
    %56 = vector.broadcast %cst_23 : f32 to vector<32x512xf32>
    %57 = arith.maximumf %55, %56 : vector<32x512xf32>
    %cst_24 = arith.constant dense<0.000000e+00> : vector<32x512xf32>
    %58 = tpu.matmul %2, %57, %cst_24 {dimension_numbers = #tpu.dot_dimension_numbers<[1], [0], [0], [1], [0, 0, 1, 1], [], []>} : vector<32x32xf32>, vector<32x512xf32>, vector<32x512xf32> -> vector<32x512xf32>
    %59 = arith.addf %58, %3 : vector<32x512xf32>
    %cst_25 = arith.constant 0.000000e+00 : f32
    %60 = vector.broadcast %cst_25 : f32 to vector<32x512xf32>
    %61 = arith.maximumf %59, %60 : vector<32x512xf32>
    %62 = arith.mulf %4, %61 : vector<32x512xf32>
    %cst_26 = arith.constant dense<0.000000e+00> : vector<512xf32>
    %63 = vector.multi_reduction <add>, %62, %cst_26 [0] : vector<32x512xf32> to vector<512xf32>
    %64 = vector.shape_cast %63 : vector<512xf32> to vector<1x512xf32>
    %65 = arith.addf %64, %5 : vector<1x512xf32>
    %66 = vector.extract_strided_slice %9 {offsets = [4, 0], sizes = [1, 512], strides = [1, 1]} : vector<8x512xf32> to vector<1x512xf32>
    %67 = vector.broadcast %66 : vector<1x512xf32> to vector<32x512xf32>
    %68 = arith.mulf %67, %0 : vector<32x512xf32>
    %69 = arith.addf %68, %1 : vector<32x512xf32>
    %cst_27 = arith.constant 0.000000e+00 : f32
    %70 = vector.broadcast %cst_27 : f32 to vector<32x512xf32>
    %71 = arith.maximumf %69, %70 : vector<32x512xf32>
    %cst_28 = arith.constant dense<0.000000e+00> : vector<32x512xf32>
    %72 = tpu.matmul %2, %71, %cst_28 {dimension_numbers = #tpu.dot_dimension_numbers<[1], [0], [0], [1], [0, 0, 1, 1], [], []>} : vector<32x32xf32>, vector<32x512xf32>, vector<32x512xf32> -> vector<32x512xf32>
    %73 = arith.addf %72, %3 : vector<32x512xf32>
    %cst_29 = arith.constant 0.000000e+00 : f32
    %74 = vector.broadcast %cst_29 : f32 to vector<32x512xf32>
    %75 = arith.maximumf %73, %74 : vector<32x512xf32>
    %76 = arith.mulf %4, %75 : vector<32x512xf32>
    %cst_30 = arith.constant dense<0.000000e+00> : vector<512xf32>
    %77 = vector.multi_reduction <add>, %76, %cst_30 [0] : vector<32x512xf32> to vector<512xf32>
    %78 = vector.shape_cast %77 : vector<512xf32> to vector<1x512xf32>
    %79 = arith.addf %78, %5 : vector<1x512xf32>
    %80 = vector.extract_strided_slice %9 {offsets = [5, 0], sizes = [1, 512], strides = [1, 1]} : vector<8x512xf32> to vector<1x512xf32>
    %81 = vector.broadcast %80 : vector<1x512xf32> to vector<32x512xf32>
    %82 = arith.mulf %81, %0 : vector<32x512xf32>
    %83 = arith.addf %82, %1 : vector<32x512xf32>
    %cst_31 = arith.constant 0.000000e+00 : f32
    %84 = vector.broadcast %cst_31 : f32 to vector<32x512xf32>
    %85 = arith.maximumf %83, %84 : vector<32x512xf32>
    %cst_32 = arith.constant dense<0.000000e+00> : vector<32x512xf32>
    %86 = tpu.matmul %2, %85, %cst_32 {dimension_numbers = #tpu.dot_dimension_numbers<[1], [0], [0], [1], [0, 0, 1, 1], [], []>} : vector<32x32xf32>, vector<32x512xf32>, vector<32x512xf32> -> vector<32x512xf32>
    %87 = arith.addf %86, %3 : vector<32x512xf32>
    %cst_33 = arith.constant 0.000000e+00 : f32
    %88 = vector.broadcast %cst_33 : f32 to vector<32x512xf32>
    %89 = arith.maximumf %87, %88 : vector<32x512xf32>
    %90 = arith.mulf %4, %89 : vector<32x512xf32>
    %cst_34 = arith.constant dense<0.000000e+00> : vector<512xf32>
    %91 = vector.multi_reduction <add>, %90, %cst_34 [0] : vector<32x512xf32> to vector<512xf32>
    %92 = vector.shape_cast %91 : vector<512xf32> to vector<1x512xf32>
    %93 = arith.addf %92, %5 : vector<1x512xf32>
    %94 = vector.extract_strided_slice %9 {offsets = [6, 0], sizes = [1, 512], strides = [1, 1]} : vector<8x512xf32> to vector<1x512xf32>
    %95 = vector.broadcast %94 : vector<1x512xf32> to vector<32x512xf32>
    %96 = arith.mulf %95, %0 : vector<32x512xf32>
    %97 = arith.addf %96, %1 : vector<32x512xf32>
    %cst_35 = arith.constant 0.000000e+00 : f32
    %98 = vector.broadcast %cst_35 : f32 to vector<32x512xf32>
    %99 = arith.maximumf %97, %98 : vector<32x512xf32>
    %cst_36 = arith.constant dense<0.000000e+00> : vector<32x512xf32>
    %100 = tpu.matmul %2, %99, %cst_36 {dimension_numbers = #tpu.dot_dimension_numbers<[1], [0], [0], [1], [0, 0, 1, 1], [], []>} : vector<32x32xf32>, vector<32x512xf32>, vector<32x512xf32> -> vector<32x512xf32>
    %101 = arith.addf %100, %3 : vector<32x512xf32>
    %cst_37 = arith.constant 0.000000e+00 : f32
    %102 = vector.broadcast %cst_37 : f32 to vector<32x512xf32>
    %103 = arith.maximumf %101, %102 : vector<32x512xf32>
    %104 = arith.mulf %4, %103 : vector<32x512xf32>
    %cst_38 = arith.constant dense<0.000000e+00> : vector<512xf32>
    %105 = vector.multi_reduction <add>, %104, %cst_38 [0] : vector<32x512xf32> to vector<512xf32>
    %106 = vector.shape_cast %105 : vector<512xf32> to vector<1x512xf32>
    %107 = arith.addf %106, %5 : vector<1x512xf32>
    %108 = vector.extract_strided_slice %9 {offsets = [7, 0], sizes = [1, 512], strides = [1, 1]} : vector<8x512xf32> to vector<1x512xf32>
    %109 = vector.broadcast %108 : vector<1x512xf32> to vector<32x512xf32>
    %110 = arith.mulf %109, %0 : vector<32x512xf32>
    %111 = arith.addf %110, %1 : vector<32x512xf32>
    %cst_39 = arith.constant 0.000000e+00 : f32
    %112 = vector.broadcast %cst_39 : f32 to vector<32x512xf32>
    %113 = arith.maximumf %111, %112 : vector<32x512xf32>
    %cst_40 = arith.constant dense<0.000000e+00> : vector<32x512xf32>
    %114 = tpu.matmul %2, %113, %cst_40 {dimension_numbers = #tpu.dot_dimension_numbers<[1], [0], [0], [1], [0, 0, 1, 1], [], []>} : vector<32x32xf32>, vector<32x512xf32>, vector<32x512xf32> -> vector<32x512xf32>
    %115 = arith.addf %114, %3 : vector<32x512xf32>
    %cst_41 = arith.constant 0.000000e+00 : f32
    %116 = vector.broadcast %cst_41 : f32 to vector<32x512xf32>
    %117 = arith.maximumf %115, %116 : vector<32x512xf32>
    %118 = arith.mulf %4, %117 : vector<32x512xf32>
    %cst_42 = arith.constant dense<0.000000e+00> : vector<512xf32>
    %119 = vector.multi_reduction <add>, %118, %cst_42 [0] : vector<32x512xf32> to vector<512xf32>
    %120 = vector.shape_cast %119 : vector<512xf32> to vector<1x512xf32>
    %121 = arith.addf %120, %5 : vector<1x512xf32>
    %122 = tpu.concatenate %23, %37, %51, %65, %79, %93, %107, %121 in 0 : vector<1x512xf32>, vector<1x512xf32>, vector<1x512xf32>, vector<1x512xf32>, vector<1x512xf32>, vector<1x512xf32>, vector<1x512xf32>, vector<1x512xf32> -> vector<8x512xf32>
    %123 = arith.index_cast %7 : i32 to index
    %c0_43 = arith.constant 0 : index
    %124 = vector.load %arg8[%123, %c0_43] : memref<8x512xf32, #tpu.memory_space<vmem>>, vector<8x512xf32>
    tpu.vector_store %arg8[%123, %c0_43], %122 {strides = array<i32>} : memref<8x512xf32, #tpu.memory_space<vmem>>, vector<8x512xf32>,
    %c1_i32 = arith.constant 1 : i32
    return
  }
  func.func @transform_0(%arg0: i32) -> (i32, i32) {
    %c0_i32 = arith.constant 0 : i32
    %c0_i32_0 = arith.constant 0 : i32
    return %arg0, %c0_i32 : i32, i32
  }
  func.func @transform_1(%arg0: i32) -> (i32, i32) {
    %c0_i32 = arith.constant 0 : i32
    %c0_i32_0 = arith.constant 0 : i32
    %c0_i32_1 = arith.constant 0 : i32
    return %c0_i32, %c0_i32_0 : i32, i32
  }
  func.func @transform_2(%arg0: i32) -> (i32, i32) {
    %c0_i32 = arith.constant 0 : i32
    %c0_i32_0 = arith.constant 0 : i32
    %c0_i32_1 = arith.constant 0 : i32
    return %c0_i32, %c0_i32_0 : i32, i32
  }
  func.func @transform_3(%arg0: i32) -> (i32, i32) {
    %c0_i32 = arith.constant 0 : i32
    %c0_i32_0 = arith.constant 0 : i32
    %c0_i32_1 = arith.constant 0 : i32
    return %c0_i32, %c0_i32_0 : i32, i32
  }
  func.func @transform_4(%arg0: i32) -> (i32, i32) {
    %c0_i32 = arith.constant 0 : i32
    %c0_i32_0 = arith.constant 0 : i32
    %c0_i32_1 = arith.constant 0 : i32
    return %c0_i32, %c0_i32_0 : i32, i32
  }
  func.func @transform_5(%arg0: i32) -> (i32, i32) {
    %c0_i32 = arith.constant 0 : i32
    %c0_i32_0 = arith.constant 0 : i32
    %c0_i32_1 = arith.constant 0 : i32
    return %c0_i32, %c0_i32_0 : i32, i32
  }
  func.func @transform_6(%arg0: i32) -> (i32, i32) {
    %c0_i32 = arith.constant 0 : i32
    %c0_i32_0 = arith.constant 0 : i32
    %c0_i32_1 = arith.constant 0 : i32
    return %c0_i32, %c0_i32_0 : i32, i32
  }
  func.func @transform_7(%arg0: i32) -> (i32, i32) {
    %c0_i32 = arith.constant 0 : i32
    %c0_i32_0 = arith.constant 0 : i32
    return %arg0, %c0_i32 : i32, i32
  }
}

</mosaic_0001>

<llo_original>
// kernel: tpu_custom_call.1
$region0: #{tpu_custom_call.1}
  #allocation0 [shape = 'u32[]', space=smem, size = 0x4, offset = 0x4, fixed_abs, tag = 'smem constant byte address 0x4 - core index']
  #allocation1 [shape = 'u32[144,128]{1,0:T(1,128)}', space=vmem, size = 0x12000, scoped, tag = 'internal scratch']
  %s0 = inlined_call_operand.hbm [shape: f32[8,512], index: 0, kind: input, shape index: {}]
  %s1 = inlined_call_operand.hbm [shape: f32[32,512], index: 1, kind: input, shape index: {}]
  %s2 = inlined_call_operand.hbm [shape: f32[32,512], index: 2, kind: input, shape index: {}]
  %s3 = inlined_call_operand.hbm [shape: f32[32,32], index: 3, kind: input, shape index: {}]
  %s4 = inlined_call_operand.hbm [shape: f32[32,512], index: 4, kind: input, shape index: {}]
  %s5 = inlined_call_operand.hbm [shape: f32[32,512], index: 5, kind: input, shape index: {}]
  %s6 = inlined_call_operand.vmem [shape: f32[1,512], index: 6, kind: input, shape index: {}]
  %s7 = inlined_call_operand.hbm [shape: f32[8,512], index: 7, kind: output, shape index: {}]
  %s8 = sld [smem:[#allocation0]]
  $region62: #{tpu_custom_call.1} parent=0
    _
  %s10 = ssub.s32 1, %s8
  %s11 = scalar_select 0, %s10, %s8
  $region1: #{tpu_custom_call.1} parent=0
    #allocation2 [shape = 'u8[16384]{0}', space=vmem, size = 0x4000, scoped, tag = 'input window, operand 0, single buffered']
    #allocation3 [shape = 's32[1]{0}', space=sflag, size = 0x4, scoped, tag = 'scoped memory for tpu_custom_call.1']
    #allocation4 [shape = 's32[1]{0}', space=sflag, size = 0x4, scoped, tag = 'scoped memory for tpu_custom_call.1']
    #allocation5 [shape = 'u8[65536]{0}', space=vmem, size = 0x10000, scoped, tag = 'input window, operand 1, single buffered']
    #allocation6 [shape = 's32[1]{0}', space=sflag, size = 0x4, scoped, tag = 'scoped memory for tpu_custom_call.1']
    #allocation7 [shape = 'u8[65536]{0}', space=vmem, size = 0x10000, scoped, tag = 'input window, operand 2, single buffered']
    #allocation8 [shape = 'u8[16384]{0}', space=vmem, size = 0x4000, scoped, tag = 'input window, operand 3, single buffered']
    #allocation9 [shape = 's32[1]{0}', space=sflag, size = 0x4, scoped, tag = 'scoped memory for tpu_custom_call.1']
    #allocation10 [shape = 'u8[65536]{0}', space=vmem, size = 0x10000, scoped, tag = 'input window, operand 4, single buffered']
    #allocation11 [shape = 'u8[65536]{0}', space=vmem, size = 0x10000, scoped, tag = 'input window, operand 5, single buffered']
    #allocation12 [shape = 's32[1]{0}', space=sflag, size = 0x4, scoped, tag = 'scoped memory for tpu_custom_call.1']
    #allocation13 [shape = 'u8[16384]{0}', space=vmem, size = 0x4000, scoped, tag = 'output window, operand 0, single buffered']
    %12 = vsyncpa [#allocation3], 0
    %13 = vsyncpa [#allocation6], 0
    %14 = vsyncpa [#allocation9], 0
    %15 = vsyncpa [#allocation12], 0
    %16 = vsyncpa [#allocation4], 0
    // Predicated region
    $region2: #{tpu_custom_call.1} parent=1 // pred_check
      _
    $region3: #{tpu_custom_call.1} parent=1 // pred_check_branch
      %18 = sbr.rel (0) target = $region5
    $region4: #{tpu_custom_call.1} parent=1 // pred_region
      %s20 = ssub.s32 512, 512
      %21 = vsyncadd [#allocation3], %s20
      %s23 = sshll.u32 [#allocation2], 4
      %s24 = int_to_ptr.vmem [resolvable:$true] %s23
      %26 = dma.hbm_to_vmem [thread:$0]  %s0, 512, %s24, [#allocation3]
    $region5: #{tpu_custom_call.1} parent=1 // pred_fallthru
      _
    // Predicated region
    $region6: #{tpu_custom_call.1} parent=1 // pred_check
      _
    $region7: #{tpu_custom_call.1} parent=1 // pred_check_branch
      %28 = sbr.rel (0) target = $region9
    $region8: #{tpu_custom_call.1} parent=1 // pred_region
      %s30 = ssub.s32 2048, 2048
      %31 = vsyncadd [#allocation6], %s30
      %s32 = sshll.u32 [#allocation5], 4
      %s33 = int_to_ptr.vmem [resolvable:$true] %s32
      %38 = dma.hbm_to_vmem [thread:$0]  %s1, 2048, %s33, [#allocation6], 512, 512, 32
    $region9: #{tpu_custom_call.1} parent=1 // pred_fallthru
      _
    // Predicated region
    $region10: #{tpu_custom_call.1} parent=1 // pred_check
      _
    $region11: #{tpu_custom_call.1} parent=1 // pred_check_branch
      %40 = sbr.rel (0) target = $region13
    $region12: #{tpu_custom_call.1} parent=1 // pred_region
      %s42 = ssub.s32 2048, 2048
      %43 = vsyncadd [#allocation6], %s42
      %s44 = sshll.u32 [#allocation7], 4
      %s45 = int_to_ptr.vmem [resolvable:$true] %s44
      %50 = dma.hbm_to_vmem [thread:$0]  %s2, 2048, %s45, [#allocation6], 512, 512, 32
    $region13: #{tpu_custom_call.1} parent=1 // pred_fallthru
      _
    // Predicated region
    $region14: #{tpu_custom_call.1} parent=1 // pred_check
      _
    $region15: #{tpu_custom_call.1} parent=1 // pred_check_branch
      %52 = sbr.rel (0) target = $region17
    $region16: #{tpu_custom_call.1} parent=1 // pred_region
      %s54 = ssub.s32 512, 512
      %55 = vsyncadd [#allocation9], %s54
      %s56 = sshll.u32 [#allocation8], 4
      %s57 = int_to_ptr.vmem [resolvable:$true] %s56
      %62 = dma.hbm_to_vmem [thread:$0]  %s3, 512, %s57, [#allocation9], 128, 128, 8
    $region17: #{tpu_custom_call.1} parent=1 // pred_fallthru
      _
    // Predicated region
    $region18: #{tpu_custom_call.1} parent=1 // pred_check
      _
    $region19: #{tpu_custom_call.1} parent=1 // pred_check_branch
      %64 = sbr.rel (0) target = $region21
    $region20: #{tpu_custom_call.1} parent=1 // pred_region
      %s66 = ssub.s32 2048, 2048
      %67 = vsyncadd [#allocation9], %s66
      %s68 = sshll.u32 [#allocation10], 4
      %s69 = int_to_ptr.vmem [resolvable:$true] %s68
      %74 = dma.hbm_to_vmem [thread:$0]  %s4, 2048, %s69, [#allocation9], 512, 512, 32
    $region21: #{tpu_custom_call.1} parent=1 // pred_fallthru
      _
    // Predicated region
    $region22: #{tpu_custom_call.1} parent=1 // pred_check
      _
    $region23: #{tpu_custom_call.1} parent=1 // pred_check_branch
      %76 = sbr.rel (0) target = $region25
    $region24: #{tpu_custom_call.1} parent=1 // pred_region
      %s78 = ssub.s32 2048, 2048
      %79 = vsyncadd [#allocation12], %s78
      %s80 = sshll.u32 [#allocation11], 4
      %s81 = int_to_ptr.vmem [resolvable:$true] %s80
      %86 = dma.hbm_to_vmem [thread:$0]  %s5, 2048, %s81, [#allocation12], 512, 512, 32
    $region25: #{tpu_custom_call.1} parent=1 // pred_fallthru
      _
    // Predicated region
    $region26: #{tpu_custom_call.1} parent=1 // pred_check
      _
    $region27: #{tpu_custom_call.1} parent=1 // pred_check_branch
      %88 = sbr.rel (0) target = $region29
    $region28: #{tpu_custom_call.1} parent=1 // pred_region
      _
    $region29: #{tpu_custom_call.1} parent=1 // pred_fallthru
      _
    // Predicated region
    $region30: #{tpu_custom_call.1} parent=1 // pred_check
      _
    $region31: #{tpu_custom_call.1} parent=1 // pred_check_branch
      %90 = sbr.rel (0) target = $region33
    $region32: #{tpu_custom_call.1} parent=1 // pred_region
      %91 = dma.done [#allocation3], 512
    $region33: #{tpu_custom_call.1} parent=1 // pred_fallthru
      _
    // Predicated region
    $region34: #{tpu_custom_call.1} parent=1 // pred_check
      _
    $region35: #{tpu_custom_call.1} parent=1 // pred_check_branch
      %93 = sbr.rel (0) target = $region37
    $region36: #{tpu_custom_call.1} parent=1 // pred_region
      %94 = dma.done [#allocation6], 2048
    $region37: #{tpu_custom_call.1} parent=1 // pred_fallthru
      _
    // Predicated region
    $region38: #{tpu_custom_call.1} parent=1 // pred_check
      _
    $region39: #{tpu_custom_call.1} parent=1 // pred_check_branch
      %96 = sbr.rel (0) target = $region41
    $region40: #{tpu_custom_call.1} parent=1 // pred_region
      %97 = dma.done [#allocation6], 2048
    $region41: #{tpu_custom_call.1} parent=1 // pred_fallthru
      _
    // Predicated region
    $region42: #{tpu_custom_call.1} parent=1 // pred_check
      _
    $region43: #{tpu_custom_call.1} parent=1 // pred_check_branch
      %99 = sbr.rel (0) target = $region45
    $region44: #{tpu_custom_call.1} parent=1 // pred_region
      %100 = dma.done [#allocation9], 512
    $region45: #{tpu_custom_call.1} parent=1 // pred_fallthru
      _
    // Predicated region
    $region46: #{tpu_custom_call.1} parent=1 // pred_check
      _
    $region47: #{tpu_custom_call.1} parent=1 // pred_check_branch
      %102 = sbr.rel (0) target = $region49
    $region48: #{tpu_custom_call.1} parent=1 // pred_region
      %103 = dma.done [#allocation9], 2048
    $region49: #{tpu_custom_call.1} parent=1 // pred_fallthru
      _
    // Predicated region
    $region50: #{tpu_custom_call.1} parent=1 // pred_check
      _
    $region51: #{tpu_custom_call.1} parent=1 // pred_check_branch
      %105 = sbr.rel (0) target = $region53
    $region52: #{tpu_custom_call.1} parent=1 // pred_region
      %106 = dma.done [#allocation12], 2048
    $region53: #{tpu_custom_call.1} parent=1 // pred_fallthru
      _
    %v107 = vld [vmem:[#allocation5] sm:$0xff]
    %v108 = vld [vmem:[#allocation5 + $0x8] sm:$0xff]
    %v109 = vld [vmem:[#allocation5 + $0x10] sm:$0xff]
    %v110 = vld [vmem:[#allocation5 + $0x18] sm:$0xff]
    %v111 = vld [vmem:[#allocation5 + $0x20] sm:$0xff]
    %v112 = vld [vmem:[#allocation5 + $0x28] sm:$0xff]
    %v113 = vld [vmem:[#allocation5 + $0x30] sm:$0xff]
    %v114 = vld [vmem:[#allocation5 + $0x38] sm:$0xff]
    %v115 = vld [vmem:[#allocation5 + $0x40] sm:$0xff]
    %v116 = vld [vmem:[#allocation5 + $0x48] sm:$0xff]
    %v117 = vld [vmem:[#allocation5 + $0x50] sm:$0xff]
    %v118 = vld [vmem:[#allocation5 + $0x58] sm:$0xff]
    %v119 = vld [vmem:[#allocation5 + $0x60] sm:$0xff]
    %v120 = vld [vmem:[#allocation5 + $0x68] sm:$0xff]
    %v121 = vld [vmem:[#allocation5 + $0x70] sm:$0xff]
    %v122 = vld [vmem:[#allocation5 + $0x78] sm:$0xff]
    %v123 = vld [vmem:[#allocation7] sm:$0xff]
    %v124 = vld [vmem:[#allocation7 + $0x8] sm:$0xff]
    %v125 = vld [vmem:[#allocation7 + $0x10] sm:$0xff]
    %v126 = vld [vmem:[#allocation7 + $0x18] sm:$0xff]
    %v127 = vld [vmem:[#allocation7 + $0x20] sm:$0xff]
    %v128 = vld [vmem:[#allocation7 + $0x28] sm:$0xff]
    %v129 = vld [vmem:[#allocation7 + $0x30] sm:$0xff]
    %v130 = vld [vmem:[#allocation7 + $0x38] sm:$0xff]
    %v131 = vld [vmem:[#allocation7 + $0x40] sm:$0xff]
    %v132 = vld [vmem:[#allocation7 + $0x48] sm:$0xff]
    %v133 = vld [vmem:[#allocation7 + $0x50] sm:$0xff]
    %v134 = vld [vmem:[#allocation7 + $0x58] sm:$0xff]
    %v135 = vld [vmem:[#allocation7 + $0x60] sm:$0xff]
    %v136 = vld [vmem:[#allocation7 + $0x68] sm:$0xff]
    %v137 = vld [vmem:[#allocation7 + $0x70] sm:$0xff]
    %v138 = vld [vmem:[#allocation7 + $0x78] sm:$0xff]
    %v139 = vld [vmem:[#allocation8] sm:$0xff]
    %v140 = vld [vmem:[#allocation8 + $0x8] sm:$0xff]
    %v141 = vld [vmem:[#allocation8 + $0x10] sm:$0xff]
    %v142 = vld [vmem:[#allocation8 + $0x18] sm:$0xff]
    %v143 = vld [vmem:[#allocation10] sm:$0xff]
    %v144 = vld [vmem:[#allocation10 + $0x8] sm:$0xff]
    %v145 = vld [vmem:[#allocation10 + $0x10] sm:$0xff]
    %v146 = vld [vmem:[#allocation10 + $0x18] sm:$0xff]
    %v147 = vld [vmem:[#allocation10 + $0x20] sm:$0xff]
    %v148 = vld [vmem:[#allocation10 + $0x28] sm:$0xff]
    %v149 = vld [vmem:[#allocation10 + $0x30] sm:$0xff]
    %v150 = vld [vmem:[#allocation10 + $0x38] sm:$0xff]
    %v151 = vld [vmem:[#allocation10 + $0x40] sm:$0xff]
    %v152 = vld [vmem:[#allocation10 + $0x48] sm:$0xff]
    %v153 = vld [vmem:[#allocation10 + $0x50] sm:$0xff]
    %v154 = vld [vmem:[#allocation10 + $0x58] sm:$0xff]
    %v155 = vld [vmem:[#allocation10 + $0x60] sm:$0xff]
    %v156 = vld [vmem:[#allocation10 + $0x68] sm:$0xff]
    %v157 = vld [vmem:[#allocation10 + $0x70] sm:$0xff]
    %v158 = vld [vmem:[#allocation10 + $0x78] sm:$0xff]
    %v159 = vld [vmem:[#allocation11] sm:$0xff]
    %v160 = vld [vmem:[#allocation11 + $0x8] sm:$0xff]
    %v161 = vld [vmem:[#allocation11 + $0x10] sm:$0xff]
    %v162 = vld [vmem:[#allocation11 + $0x18] sm:$0xff]
    %v163 = vld [vmem:[#allocation11 + $0x20] sm:$0xff]
    %v164 = vld [vmem:[#allocation11 + $0x28] sm:$0xff]
    %v165 = vld [vmem:[#allocation11 + $0x30] sm:$0xff]
    %v166 = vld [vmem:[#allocation11 + $0x38] sm:$0xff]
    %v167 = vld [vmem:[#allocation11 + $0x40] sm:$0xff]
    %v168 = vld [vmem:[#allocation11 + $0x48] sm:$0xff]
    %v169 = vld [vmem:[#allocation11 + $0x50] sm:$0xff]
    %v170 = vld [vmem:[#allocation11 + $0x58] sm:$0xff]
    %v171 = vld [vmem:[#allocation11 + $0x60] sm:$0xff]
    %v172 = vld [vmem:[#allocation11 + $0x68] sm:$0xff]
    %v173 = vld [vmem:[#allocation11 + $0x70] sm:$0xff]
    %v174 = vld [vmem:[#allocation11 + $0x78] sm:$0xff]
    %v175 = vld [vmem:[%s6] sm:$0xf]
    %s176 = smul.u32 0, 4
    %s177 = smul.addr %s176, 8
    %s178 = scalar_lea.vmem [#allocation2], %s177
    %v179 = vld [vmem:[%s178] sm:$0xff]
    %v180 = vld [vmem:[%s178 + $0x8] sm:$0xff]
    %v181 = vld [vmem:[%s178 + $0x10] sm:$0xff]
    %v182 = vld [vmem:[%s178 + $0x18] sm:$0xff]
    %v183 = vlaneseq
    %v184 = vshrl.u32 %v183, 7
    %v185 = vsub.s32 0, %v184
    %v186 = vrot.slane %v179, %v185
    %v187 = vlaneseq
    %v188 = vshrl.u32 %v187, 7
    %v189 = vsub.s32 0, %v188
    %v190 = vrot.slane %v180, %v189
    %v191 = vlaneseq
    %v192 = vshrl.u32 %v191, 7
    %v193 = vsub.s32 0, %v192
    %v194 = vrot.slane %v181, %v193
    %v195 = vlaneseq
    %v196 = vshrl.u32 %v195, 7
    %v197 = vsub.s32 0, %v196
    %v198 = vrot.slane %v182, %v197
    %v199 = vmul.f32 %v186, %v107
    %v200 = vmul.f32 %v190, %v108
    %v201 = vmul.f32 %v194, %v109
    %v202 = vmul.f32 %v198, %v110
    %v203 = vmul.f32 %v186, %v111
    %v204 = vmul.f32 %v190, %v112
    %v205 = vmul.f32 %v194, %v113
    %v206 = vmul.f32 %v198, %v114
    %v207 = vmul.f32 %v186, %v115
    %v208 = vmul.f32 %v190, %v116
    %v209 = vmul.f32 %v194, %v117
    %v210 = vmul.f32 %v198, %v118
    %v211 = vmul.f32 %v186, %v119
    %v212 = vmul.f32 %v190, %v120
    %v213 = vmul.f32 %v194, %v121
    %v214 = vmul.f32 %v198, %v122
    %v215 = vadd.f32 %v199, %v123
    %v216 = vadd.f32 %v200, %v124
    %v217 = vadd.f32 %v201, %v125
    %v218 = vadd.f32 %v202, %v126
    %v219 = vadd.f32 %v203, %v127
    %v220 = vadd.f32 %v204, %v128
    %v221 = vadd.f32 %v205, %v129
    %v222 = vadd.f32 %v206, %v130
    %v223 = vadd.f32 %v207, %v131
    %v224 = vadd.f32 %v208, %v132
    %v225 = vadd.f32 %v209, %v133
    %v226 = vadd.f32 %v210, %v134
    %v227 = vadd.f32 %v211, %v135
    %v228 = vadd.f32 %v212, %v136
    %v229 = vadd.f32 %v213, %v137
    %v230 = vadd.f32 %v214, %v138
    %v231 = vmax.f32 %v215, 0.0
    %v232 = vmax.f32 %v216, 0.0
    %v233 = vmax.f32 %v217, 0.0
    %v234 = vmax.f32 %v218, 0.0
    %v235 = vmax.f32 %v219, 0.0
    %v236 = vmax.f32 %v220, 0.0
    %v237 = vmax.f32 %v221, 0.0
    %v238 = vmax.f32 %v222, 0.0
    %v239 = vmax.f32 %v223, 0.0
    %v240 = vmax.f32 %v224, 0.0
    %v241 = vmax.f32 %v225, 0.0
    %v242 = vmax.f32 %v226, 0.0
    %v243 = vmax.f32 %v227, 0.0
    %v244 = vmax.f32 %v228, 0.0
    %v245 = vmax.f32 %v229, 0.0
    %v246 = vmax.f32 %v230, 0.0
    %vm247 = vcmask 261120
    %v249 = vsel %vm247, %v139, 0
    %v252 = vsel %vm247, %v140, 0
    %v255 = vsel %vm247, %v141, 0
    %v258 = vsel %vm247, %v142, 0
    %260 = vmatprep.subr.mxu0 0.0
    %261 = vmatpush1.msra.mxu0 0.0
    %262 = vmatprep.subr.mxu0 0.0
    %263 = vmatpush1.msra.mxu0 0.0
    %264 = vmatprep.subr.mxu0 0.0
    %265 = vmatpush1.msra.mxu0 0.0
    %266 = vmatprep.subr.mxu0 0.0
    %267 = vmatpush1.msra.mxu0 0.0
    %268 = vmatprep.subr.mxu0 0.0
    %269 = vmatpush1.msra.mxu0 0.0
    %270 = vmatprep.subr.mxu0 0.0
    %271 = vmatpush1.msra.mxu0 0.0
    %272 = vmatprep.subr.mxu0 0.0
    %273 = vmatpush1.msra.mxu0 0.0
    %274 = vmatprep.subr.mxu0 0.0
    %275 = vmatpush1.msra.mxu0 0.0
    %276 = vmatprep.subr.mxu0 0.0
    %277 = vmatpush1.msra.mxu0 0.0
    %278 = vmatprep.subr.mxu0 0.0
    %279 = vmatpush1.msra.mxu0 0.0
    %280 = vmatprep.subr.mxu0 0.0
    %281 = vmatpush1.msra.mxu0 0.0
    %282 = vmatprep.subr.mxu0 0.0
    %283 = vmatpush1.msra.mxu0 0.0
    %284 = vmatprep.subr.mxu0 %v244
    %285 = vmatpush1.msra.mxu0 %v243
    %286 = vmatprep.subr.mxu0 %v240
    %287 = vmatpush1.msra.mxu0 %v239
    %288 = vmatprep.subr.mxu0 %v236
    %289 = vmatpush1.msra.mxu0 %v235
    %290 = vmatprep.subr.mxu0 %v232
    %291 = vmatpush1.msra.mxu0 %v231
    %292 = vmatprep.subr.mxu0 0.0
    %293 = vmatpush2.msra.mxu0 0.0
    %294 = vmatprep.subr.mxu0 0.0
    %295 = vmatpush2.msra.mxu0 0.0
    %296 = vmatprep.subr.mxu0 0.0
    %297 = vmatpush2.msra.mxu0 0.0
    %298 = vmatprep.subr.mxu0 0.0
    %299 = vmatpush2.msra.mxu0 0.0
    %300 = vmatprep.subr.mxu0 0.0
    %301 = vmatpush2.msra.mxu0 0.0
    %302 = vmatprep.subr.mxu0 0.0
    %303 = vmatpush2.msra.mxu0 0.0
    %304 = vmatprep.subr.mxu0 0.0
    %305 = vmatpush2.msra.mxu0 0.0
    %306 = vmatprep.subr.mxu0 0.0
    %307 = vmatpush2.msra.mxu0 0.0
    %308 = vmatprep.subr.mxu0 0.0
    %309 = vmatpush2.msra.mxu0 0.0
    %310 = vmatprep.subr.mxu0 0.0
    %311 = vmatpush2.msra.mxu0 0.0
    %312 = vmatprep.subr.mxu0 0.0
    %313 = vmatpush2.msra.mxu0 0.0
    %314 = vmatprep.subr.mxu0 0.0
    %315 = vmatpush2.msra.mxu0 0.0
    %316 = vmatprep.subr.mxu0 0.0
    %317 = vmatpush2.msra.mxu0 0.0
    %318 = vmatprep.subr.mxu0 0.0
    %319 = vmatpush2.msra.mxu0 0.0
    %320 = vmatprep.subr.mxu0 0.0
    %321 = vmatpush2.msra.mxu0 0.0
    %322 = vmatprep.subr.mxu0 0.0
    %323 = vmatpush2.msra.mxu0 0.0
    %324 = vmatprep.mubr.f32.mxu0 0.0
    %325 = vmatmul.mubr.f32.gmra.mxu0 %v249
    %v326 = vpop.f32.mrf.mxu0
    %v327 = vadd.f32 %v143, %v326
    %v328 = vpop.f32.mrf.mxu0
    %v329 = vadd.f32 %v144, %v328
    %330 = vmatprep.mubr.f32.mxu0 0.0
    %331 = vmatmul.mubr.f32.gmra.mxu0 %v252
    %v332 = vpop.f32.mrf.mxu0
    %v333 = vadd.f32 %v147, %v332
    %v334 = vpop.f32.mrf.mxu0
    %v335 = vadd.f32 %v148, %v334
    %336 = vmatprep.mubr.f32.mxu0 0.0
    %337 = vmatmul.mubr.f32.gmra.mxu0 %v255
    %v338 = vpop.f32.mrf.mxu0
    %v339 = vadd.f32 %v151, %v338
    %v340 = vpop.f32.mrf.mxu0
    %v341 = vadd.f32 %v152, %v340
    %342 = vmatprep.mubr.f32.mxu0 0.0
    %343 = vmatmul.mubr.f32.gmra.mxu0 %v258
    %v344 = vpop.f32.mrf.mxu0
    %v345 = vadd.f32 %v155, %v344
    %v346 = vpop.f32.mrf.mxu0
    %v347 = vadd.f32 %v156, %v346
    %348 = vdwg.mxu0
    %349 = vmatprep.subr.mxu0 0.0
    %350 = vmatpush1.msra.mxu0 0.0
    %351 = vmatprep.subr.mxu0 0.0
    %352 = vmatpush1.msra.mxu0 0.0
    %353 = vmatprep.subr.mxu0 0.0
    %354 = vmatpush1.msra.mxu0 0.0
    %355 = vmatprep.subr.mxu0 0.0
    %356 = vmatpush1.msra.mxu0 0.0
    %357 = vmatprep.subr.mxu0 0.0
    %358 = vmatpush1.msra.mxu0 0.0
    %359 = vmatprep.subr.mxu0 0.0
    %360 = vmatpush1.msra.mxu0 0.0
    %361 = vmatprep.subr.mxu0 0.0
    %362 = vmatpush1.msra.mxu0 0.0
    %363 = vmatprep.subr.mxu0 0.0
    %364 = vmatpush1.msra.mxu0 0.0
    %365 = vmatprep.subr.mxu0 0.0
    %366 = vmatpush1.msra.mxu0 0.0
    %367 = vmatprep.subr.mxu0 0.0
    %368 = vmatpush1.msra.mxu0 0.0
    %369 = vmatprep.subr.mxu0 0.0
    %370 = vmatpush1.msra.mxu0 0.0
    %371 = vmatprep.subr.mxu0 0.0
    %372 = vmatpush1.msra.mxu0 0.0
    %373 = vmatprep.subr.mxu0 %v246
    %374 = vmatpush1.msra.mxu0 %v245
    %375 = vmatprep.subr.mxu0 %v242
    %376 = vmatpush1.msra.mxu0 %v241
    %377 = vmatprep.subr.mxu0 %v238
    %378 = vmatpush1.msra.mxu0 %v237
    %379 = vmatprep.subr.mxu0 %v234
    %380 = vmatpush1.msra.mxu0 %v233
    %381 = vmatprep.subr.mxu0 0.0
    %382 = vmatpush2.msra.mxu0 0.0
    %383 = vmatprep.subr.mxu0 0.0
    %384 = vmatpush2.msra.mxu0 0.0
    %385 = vmatprep.subr.mxu0 0.0
    %386 = vmatpush2.msra.mxu0 0.0
    %387 = vmatprep.subr.mxu0 0.0
    %388 = vmatpush2.msra.mxu0 0.0
    %389 = vmatprep.subr.mxu0 0.0
    %390 = vmatpush2.msra.mxu0 0.0
    %391 = vmatprep.subr.mxu0 0.0
    %392 = vmatpush2.msra.mxu0 0.0
    %393 = vmatprep.subr.mxu0 0.0
    %394 = vmatpush2.msra.mxu0 0.0
    %395 = vmatprep.subr.mxu0 0.0
    %396 = vmatpush2.msra.mxu0 0.0
    %397 = vmatprep.subr.mxu0 0.0
    %398 = vmatpush2.msra.mxu0 0.0
    %399 = vmatprep.subr.mxu0 0.0
    %400 = vmatpush2.msra.mxu0 0.0
    %401 = vmatprep.subr.mxu0 0.0
    %402 = vmatpush2.msra.mxu0 0.0
    %403 = vmatprep.subr.mxu0 0.0
    %404 = vmatpush2.msra.mxu0 0.0
    %405 = vmatprep.subr.mxu0 0.0
    %406 = vmatpush2.msra.mxu0 0.0
    %407 = vmatprep.subr.mxu0 0.0
    %408 = vmatpush2.msra.mxu0 0.0
    %409 = vmatprep.subr.mxu0 0.0
    %410 = vmatpush2.msra.mxu0 0.0
    %411 = vmatprep.subr.mxu0 0.0
    %412 = vmatpush2.msra.mxu0 0.0
    %413 = vmatprep.mubr.f32.mxu0 0.0
    %414 = vmatmul.mubr.f32.gmra.mxu0 %v249
    %v415 = vpop.f32.mrf.mxu0
    %v416 = vadd.f32 %v145, %v415
    %v417 = vpop.f32.mrf.mxu0
    %v418 = vadd.f32 %v146, %v417
    %419 = vmatprep.mubr.f32.mxu0 0.0
    %420 = vmatmul.mubr.f32.gmra.mxu0 %v252
    %v421 = vpop.f32.mrf.mxu0
    %v422 = vadd.f32 %v149, %v421
    %v423 = vpop.f32.mrf.mxu0
    %v424 = vadd.f32 %v150, %v423
    %425 = vmatprep.mubr.f32.mxu0 0.0
    %426 = vmatmul.mubr.f32.gmra.mxu0 %v255
    %v427 = vpop.f32.mrf.mxu0
    %v428 = vadd.f32 %v153, %v427
    %v429 = vpop.f32.mrf.mxu0
    %v430 = vadd.f32 %v154, %v429
    %431 = vmatprep.mubr.f32.mxu0 0.0
    %432 = vmatmul.mubr.f32.gmra.mxu0 %v258
    %v433 = vpop.f32.mrf.mxu0
    %v434 = vadd.f32 %v157, %v433
    %v435 = vpop.f32.mrf.mxu0
    %v436 = vadd.f32 %v158, %v435
    %437 = vdwg.mxu0
    %v438 = vmax.f32 %v327, 0.0
    %v439 = vmax.f32 %v329, 0.0
    %v440 = vmax.f32 %v416, 0.0
    %v441 = vmax.f32 %v418, 0.0
    %v442 = vmax.f32 %v333, 0.0
    %v443 = vmax.f32 %v335, 0.0
    %v444 = vmax.f32 %v422, 0.0
    %v445 = vmax.f32 %v424, 0.0
    %v446 = vmax.f32 %v339, 0.0
    %v447 = vmax.f32 %v341, 0.0
    %v448 = vmax.f32 %v428, 0.0
    %v449 = vmax.f32 %v430, 0.0
    %v450 = vmax.f32 %v345, 0.0
    %v451 = vmax.f32 %v347, 0.0
    %v452 = vmax.f32 %v434, 0.0
    %v453 = vmax.f32 %v436, 0.0
    %v454 = vmul.f32 %v159, %v438
    %v455 = vmul.f32 %v160, %v439
    %v456 = vmul.f32 %v161, %v440
    %v457 = vmul.f32 %v162, %v441
    %v458 = vmul.f32 %v163, %v442
    %v459 = vmul.f32 %v164, %v443
    %v460 = vmul.f32 %v165, %v444
    %v461 = vmul.f32 %v166, %v445
    %v462 = vmul.f32 %v167, %v446
    %v463 = vmul.f32 %v168, %v447
    %v464 = vmul.f32 %v169, %v448
    %v465 = vmul.f32 %v170, %v449
    %v466 = vmul.f32 %v171, %v450
    %v467 = vmul.f32 %v172, %v451
    %v468 = vmul.f32 %v173, %v452
    %v469 = vmul.f32 %v174, %v453
    %v470 = vadd.f32 %v454, %v458
    %v471 = vadd.f32 %v470, %v462
    %v472 = vadd.f32 %v471, %v466
    %v473 = vrot.slane %v472, 4
    %v474 = vadd.f32 %v472, %v473
    %v475 = vrot.slane %v474, 2
    %v476 = vadd.f32 %v474, %v475
    %v477 = vrot.slane %v476, 1
    %v478 = vadd.f32 %v476, %v477
    %v479 = vadd.f32 %v455, %v459
    %v480 = vadd.f32 %v479, %v463
    %v481 = vadd.f32 %v480, %v467
    %v482 = vrot.slane %v481, 4
    %v483 = vadd.f32 %v481, %v482
    %v484 = vrot.slane %v483, 2
    %v485 = vadd.f32 %v483, %v484
    %v486 = vrot.slane %v485, 1
    %v487 = vadd.f32 %v485, %v486
    %v488 = vadd.f32 %v456, %v460
    %v489 = vadd.f32 %v488, %v464
    %v490 = vadd.f32 %v489, %v468
    %v491 = vrot.slane %v490, 4
    %v492 = vadd.f32 %v490, %v491
    %v493 = vrot.slane %v492, 2
    %v494 = vadd.f32 %v492, %v493
    %v495 = vrot.slane %v494, 1
    %v496 = vadd.f32 %v494, %v495
    %v497 = vadd.f32 %v457, %v461
    %v498 = vadd.f32 %v497, %v465
    %v499 = vadd.f32 %v498, %v469
    %v500 = vrot.slane %v499, 4
    %v501 = vadd.f32 %v499, %v500
    %v502 = vrot.slane %v501, 2
    %v503 = vadd.f32 %v501, %v502
    %v504 = vrot.slane %v503, 1
    %v505 = vadd.f32 %v503, %v504
    %v507 = vlaneseq
    %v508 = vshrl.u32 %v507, 7
    %v509 = vsub.s32 0, %v508
    %v510 = vrot.slane %v175, %v509
    %v511 = vlaneseq
    %v512 = vshrl.u32 %v511, 7
    %v513 = vsub.s32 1, %v512
    %v514 = vrot.slane %v175, %v513
    %v515 = vlaneseq
    %v516 = vshrl.u32 %v515, 7
    %v517 = vsub.s32 2, %v516
    %v518 = vrot.slane %v175, %v517
    %v519 = vlaneseq
    %v520 = vshrl.u32 %v519, 7
    %v521 = vsub.s32 3, %v520
    %v522 = vrot.slane %v175, %v521
    %v527 = vadd.f32 %v478, %v510
    %v528 = vadd.f32 %v487, %v514
    %v529 = vadd.f32 %v496, %v518
    %v530 = vadd.f32 %v505, %v522
    %v531 = vlaneseq
    %v532 = vshrl.u32 %v531, 7
    %v533 = vsub.s32 1, %v532
    %v534 = vrot.slane %v179, %v533
    %v535 = vlaneseq
    %v536 = vshrl.u32 %v535, 7
    %v537 = vsub.s32 1, %v536
    %v538 = vrot.slane %v180, %v537
    %v539 = vlaneseq
    %v540 = vshrl.u32 %v539, 7
    %v541 = vsub.s32 1, %v540
    %v542 = vrot.slane %v181, %v541
    %v543 = vlaneseq
    %v544 = vshrl.u32 %v543, 7
    %v545 = vsub.s32 1, %v544
    %v546 = vrot.slane %v182, %v545
    %v547 = vmul.f32 %v534, %v107
    %v548 = vmul.f32 %v538, %v108
    %v549 = vmul.f32 %v542, %v109
    %v550 = vmul.f32 %v546, %v110
    %v551 = vmul.f32 %v534, %v111
    %v552 = vmul.f32 %v538, %v112
    %v553 = vmul.f32 %v542, %v113
    %v554 = vmul.f32 %v546, %v114
    %v555 = vmul.f32 %v534, %v115
    %v556 = vmul.f32 %v538, %v116
    %v557 = vmul.f32 %v542, %v117
    %v558 = vmul.f32 %v546, %v118
    %v559 = vmul.f32 %v534, %v119
    %v560 = vmul.f32 %v538, %v120
    %v561 = vmul.f32 %v542, %v121
    %v562 = vmul.f32 %v546, %v122
    %v563 = vadd.f32 %v547, %v123
    %v564 = vadd.f32 %v548, %v124
    %v565 = vadd.f32 %v549, %v125
    %v566 = vadd.f32 %v550, %v126
    %v567 = vadd.f32 %v551, %v127
    %v568 = vadd.f32 %v552, %v128
    %v569 = vadd.f32 %v553, %v129
    %v570 = vadd.f32 %v554, %v130
    %v571 = vadd.f32 %v555, %v131
    %v572 = vadd.f32 %v556, %v132
    %v573 = vadd.f32 %v557, %v133
    %v574 = vadd.f32 %v558, %v134
    %v575 = vadd.f32 %v559, %v135
    %v576 = vadd.f32 %v560, %v136
    %v577 = vadd.f32 %v561, %v137
    %v578 = vadd.f32 %v562, %v138
    %v579 = vmax.f32 %v563, 0.0
    %v580 = vmax.f32 %v564, 0.0
    %v581 = vmax.f32 %v565, 0.0
    %v582 = vmax.f32 %v566, 0.0
    %v583 = vmax.f32 %v567, 0.0
    %v584 = vmax.f32 %v568, 0.0
    %v585 = vmax.f32 %v569, 0.0
    %v586 = vmax.f32 %v570, 0.0
    %v587 = vmax.f32 %v571, 0.0
    %v588 = vmax.f32 %v572, 0.0
    %v589 = vmax.f32 %v573, 0.0
    %v590 = vmax.f32 %v574, 0.0
    %v591 = vmax.f32 %v575, 0.0
    %v592 = vmax.f32 %v576, 0.0
    %v593 = vmax.f32 %v577, 0.0
    %v594 = vmax.f32 %v578, 0.0
    %595 = vmatprep.subr.mxu0 0.0
    %596 = vmatpush1.msra.mxu0 0.0
    %597 = vmatprep.subr.mxu0 0.0
    %598 = vmatpush1.msra.mxu0 0.0
    %599 = vmatprep.subr.mxu0 0.0
    %600 = vmatpush1.msra.mxu0 0.0
    %601 = vmatprep.subr.mxu0 0.0
    %602 = vmatpush1.msra.mxu0 0.0
    %603 = vmatprep.subr.mxu0 0.0
    %604 = vmatpush1.msra.mxu0 0.0
    %605 = vmatprep.subr.mxu0 0.0
    %606 = vmatpush1.msra.mxu0 0.0
    %607 = vmatprep.subr.mxu0 0.0
    %608 = vmatpush1.msra.mxu0 0.0
    %609 = vmatprep.subr.mxu0 0.0
    %610 = vmatpush1.msra.mxu0 0.0
    %611 = vmatprep.subr.mxu0 0.0
    %612 = vmatpush1.msra.mxu0 0.0
    %613 = vmatprep.subr.mxu0 0.0
    %614 = vmatpush1.msra.mxu0 0.0
    %615 = vmatprep.subr.mxu0 0.0
    %616 = vmatpush1.msra.mxu0 0.0
    %617 = vmatprep.subr.mxu0 0.0
    %618 = vmatpush1.msra.mxu0 0.0
    %619 = vmatprep.subr.mxu0 %v592
    %620 = vmatpush1.msra.mxu0 %v591
    %621 = vmatprep.subr.mxu0 %v588
    %622 = vmatpush1.msra.mxu0 %v587
    %623 = vmatprep.subr.mxu0 %v584
    %624 = vmatpush1.msra.mxu0 %v583
    %625 = vmatprep.subr.mxu0 %v580
    %626 = vmatpush1.msra.mxu0 %v579
    %627 = vmatprep.subr.mxu0 0.0
    %628 = vmatpush2.msra.mxu0 0.0
    %629 = vmatprep.subr.mxu0 0.0
    %630 = vmatpush2.msra.mxu0 0.0
    %631 = vmatprep.subr.mxu0 0.0
    %632 = vmatpush2.msra.mxu0 0.0
    %633 = vmatprep.subr.mxu0 0.0
    %634 = vmatpush2.msra.mxu0 0.0
    %635 = vmatprep.subr.mxu0 0.0
    %636 = vmatpush2.msra.mxu0 0.0
    %637 = vmatprep.subr.mxu0 0.0
    %638 = vmatpush2.msra.mxu0 0.0
    %639 = vmatprep.subr.mxu0 0.0
    %640 = vmatpush2.msra.mxu0 0.0
    %641 = vmatprep.subr.mxu0 0.0
    %642 = vmatpush2.msra.mxu0 0.0
    %643 = vmatprep.subr.mxu0 0.0
    %644 = vmatpush2.msra.mxu0 0.0
    %645 = vmatprep.subr.mxu0 0.0
    %646 = vmatpush2.msra.mxu0 0.0
    %647 = vmatprep.subr.mxu0 0.0
    %648 = vmatpush2.msra.mxu0 0.0
    %649 = vmatprep.subr.mxu0 0.0
    %650 = vmatpush2.msra.mxu0 0.0
    %651 = vmatprep.subr.mxu0 0.0
    %652 = vmatpush2.msra.mxu0 0.0
    %653 = vmatprep.subr.mxu0 0.0
    %654 = vmatpush2.msra.mxu0 0.0
    %655 = vmatprep.subr.mxu0 0.0
    %656 = vmatpush2.msra.mxu0 0.0
    %657 = vmatprep.subr.mxu0 0.0
    %658 = vmatpush2.msra.mxu0 0.0
    %659 = vmatprep.mubr.f32.mxu0 0.0
    %660 = vmatmul.mubr.f32.gmra.mxu0 %v249
    %v661 = vpop.f32.mrf.mxu0
    %v662 = vadd.f32 %v143, %v661
    %v663 = vpop.f32.mrf.mxu0
    %v664 = vadd.f32 %v144, %v663
    %665 = vmatprep.mubr.f32.mxu0 0.0
    %666 = vmatmul.mubr.f32.gmra.mxu0 %v252
    %v667 = vpop.f32.mrf.mxu0
    %v668 = vadd.f32 %v147, %v667
    %v669 = vpop.f32.mrf.mxu0
    %v670 = vadd.f32 %v148, %v669
    %671 = vmatprep.mubr.f32.mxu0 0.0
    %672 = vmatmul.mubr.f32.gmra.mxu0 %v255
    %v673 = vpop.f32.mrf.mxu0
    %v674 = vadd.f32 %v151, %v673
    %v675 = vpop.f32.mrf.mxu0
    %v676 = vadd.f32 %v152, %v675
    %677 = vmatprep.mubr.f32.mxu0 0.0
    %678 = vmatmul.mubr.f32.gmra.mxu0 %v258
    %v679 = vpop.f32.mrf.mxu0
    %v680 = vadd.f32 %v155, %v679
    %v681 = vpop.f32.mrf.mxu0
    %v682 = vadd.f32 %v156, %v681
    %683 = vdwg.mxu0
    %684 = vmatprep.subr.mxu0 0.0
    %685 = vmatpush1.msra.mxu0 0.0
    %686 = vmatprep.subr.mxu0 0.0
    %687 = vmatpush1.msra.mxu0 0.0
    %688 = vmatprep.subr.mxu0 0.0
    %689 = vmatpush1.msra.mxu0 0.0
    %690 = vmatprep.subr.mxu0 0.0
    %691 = vmatpush1.msra.mxu0 0.0
    %692 = vmatprep.subr.mxu0 0.0
    %693 = vmatpush1.msra.mxu0 0.0
    %694 = vmatprep.subr.mxu0 0.0
    %695 = vmatpush1.msra.mxu0 0.0
    %696 = vmatprep.subr.mxu0 0.0
    %697 = vmatpush1.msra.mxu0 0.0
    %698 = vmatprep.subr.mxu0 0.0
    %699 = vmatpush1.msra.mxu0 0.0
    %700 = vmatprep.subr.mxu0 0.0
    %701 = vmatpush1.msra.mxu0 0.0
    %702 = vmatprep.subr.mxu0 0.0
    %703 = vmatpush1.msra.mxu0 0.0
    %704 = vmatprep.subr.mxu0 0.0
    %705 = vmatpush1.msra.mxu0 0.0
    %706 = vmatprep.subr.mxu0 0.0
    %707 = vmatpush1.msra.mxu0 0.0
    %708 = vmatprep.subr.mxu0 %v594
    %709 = vmatpush1.msra.mxu0 %v593
    %710 = vmatprep.subr.mxu0 %v590
    %711 = vmatpush1.msra.mxu0 %v589
    %712 = vmatprep.subr.mxu0 %v586
    %713 = vmatpush1.msra.mxu0 %v585
    %714 = vmatprep.subr.mxu0 %v582
    %715 = vmatpush1.msra.mxu0 %v581
    %716 = vmatprep.subr.mxu0 0.0
    %717 = vmatpush2.msra.mxu0 0.0
    %718 = vmatprep.subr.mxu0 0.0
    %719 = vmatpush2.msra.mxu0 0.0
    %720 = vmatprep.subr.mxu0 0.0
    %721 = vmatpush2.msra.mxu0 0.0
    %722 = vmatprep.subr.mxu0 0.0
    %723 = vmatpush2.msra.mxu0 0.0
    %724 = vmatprep.subr.mxu0 0.0
    %725 = vmatpush2.msra.mxu0 0.0
    %726 = vmatprep.subr.mxu0 0.0
    %727 = vmatpush2.msra.mxu0 0.0
    %728 = vmatprep.subr.mxu0 0.0
    %729 = vmatpush2.msra.mxu0 0.0
    %730 = vmatprep.subr.mxu0 0.0
    %731 = vmatpush2.msra.mxu0 0.0
    %732 = vmatprep.subr.mxu0 0.0
    %733 = vmatpush2.msra.mxu0 0.0
    %734 = vmatprep.subr.mxu0 0.0
    %735 = vmatpush2.msra.mxu0 0.0
    %736 = vmatprep.subr.mxu0 0.0
    %737 = vmatpush2.msra.mxu0 0.0
    %738 = vmatprep.subr.mxu0 0.0
    %739 = vmatpush2.msra.mxu0 0.0
    %740 = vmatprep.subr.mxu0 0.0
    %741 = vmatpush2.msra.mxu0 0.0
    %742 = vmatprep.subr.mxu0 0.0
    %743 = vmatpush2.msra.mxu0 0.0
    %744 = vmatprep.subr.mxu0 0.0
    %745 = vmatpush2.msra.mxu0 0.0
    %746 = vmatprep.subr.mxu0 0.0
    %747 = vmatpush2.msra.mxu0 0.0
    %748 = vmatprep.mubr.f32.mxu0 0.0
    %749 = vmatmul.mubr.f32.gmra.mxu0 %v249
    %v750 = vpop.f32.mrf.mxu0
    %v751 = vadd.f32 %v145, %v750
    %v752 = vpop.f32.mrf.mxu0
    %v753 = vadd.f32 %v146, %v752
    %754 = vmatprep.mubr.f32.mxu0 0.0
    %755 = vmatmul.mubr.f32.gmra.mxu0 %v252
    %v756 = vpop.f32.mrf.mxu0
    %v757 = vadd.f32 %v149, %v756
    %v758 = vpop.f32.mrf.mxu0
    %v759 = vadd.f32 %v150, %v758
    %760 = vmatprep.mubr.f32.mxu0 0.0
    %761 = vmatmul.mubr.f32.gmra.mxu0 %v255
    %v762 = vpop.f32.mrf.mxu0
    %v763 = vadd.f32 %v153, %v762
    %v764 = vpop.f32.mrf.mxu0
    %v765 = vadd.f32 %v154, %v764
    %766 = vmatprep.mubr.f32.mxu0 0.0
    %767 = vmatmul.mubr.f32.gmra.mxu0 %v258
    %v768 = vpop.f32.mrf.mxu0
    %v769 = vadd.f32 %v157, %v768
    %v770 = vpop.f32.mrf.mxu0
    %v771 = vadd.f32 %v158, %v770
    %772 = vdwg.mxu0
    %v773 = vmax.f32 %v662, 0.0
    %v774 = vmax.f32 %v664, 0.0
    %v775 = vmax.f32 %v751, 0.0
    %v776 = vmax.f32 %v753, 0.0
    %v777 = vmax.f32 %v668, 0.0
    %v778 = vmax.f32 %v670, 0.0
    %v779 = vmax.f32 %v757, 0.0
    %v780 = vmax.f32 %v759, 0.0
    %v781 = vmax.f32 %v674, 0.0
    %v782 = vmax.f32 %v676, 0.0
    %v783 = vmax.f32 %v763, 0.0
    %v784 = vmax.f32 %v765, 0.0
    %v785 = vmax.f32 %v680, 0.0
    %v786 = vmax.f32 %v682, 0.0
    %v787 = vmax.f32 %v769, 0.0
    %v788 = vmax.f32 %v771, 0.0
    %v789 = vmul.f32 %v159, %v773
    %v790 = vmul.f32 %v160, %v774
    %v791 = vmul.f32 %v161, %v775
    %v792 = vmul.f32 %v162, %v776
    %v793 = vmul.f32 %v163, %v777
    %v794 = vmul.f32 %v164, %v778
    %v795 = vmul.f32 %v165, %v779
    %v796 = vmul.f32 %v166, %v780
    %v797 = vmul.f32 %v167, %v781
    %v798 = vmul.f32 %v168, %v782
    %v799 = vmul.f32 %v169, %v783
    %v800 = vmul.f32 %v170, %v784
    %v801 = vmul.f32 %v171, %v785
    %v802 = vmul.f32 %v172, %v786
    %v803 = vmul.f32 %v173, %v787
    %v804 = vmul.f32 %v174, %v788
    %v805 = vadd.f32 %v789, %v793
    %v806 = vadd.f32 %v805, %v797
    %v807 = vadd.f32 %v806, %v801
    %v808 = vrot.slane %v807, 4
    %v809 = vadd.f32 %v807, %v808
    %v810 = vrot.slane %v809, 2
    %v811 = vadd.f32 %v809, %v810
    %v812 = vrot.slane %v811, 1
    %v813 = vadd.f32 %v811, %v812
    %v814 = vadd.f32 %v790, %v794
    %v815 = vadd.f32 %v814, %v798
    %v816 = vadd.f32 %v815, %v802
    %v817 = vrot.slane %v816, 4
    %v818 = vadd.f32 %v816, %v817
    %v819 = vrot.slane %v818, 2
    %v820 = vadd.f32 %v818, %v819
    %v821 = vrot.slane %v820, 1
    %v822 = vadd.f32 %v820, %v821
    %v823 = vadd.f32 %v791, %v795
    %v824 = vadd.f32 %v823, %v799
    %v825 = vadd.f32 %v824, %v803
    %v826 = vrot.slane %v825, 4
    %v827 = vadd.f32 %v825, %v826
    %v828 = vrot.slane %v827, 2
    %v829 = vadd.f32 %v827, %v828
    %v830 = vrot.slane %v829, 1
    %v831 = vadd.f32 %v829, %v830
    %v832 = vadd.f32 %v792, %v796
    %v833 = vadd.f32 %v832, %v800
    %v834 = vadd.f32 %v833, %v804
    %v835 = vrot.slane %v834, 4
    %v836 = vadd.f32 %v834, %v835
    %v837 = vrot.slane %v836, 2
    %v838 = vadd.f32 %v836, %v837
    %v839 = vrot.slane %v838, 1
    %v840 = vadd.f32 %v838, %v839
    %v841 = vadd.f32 %v813, %v510
    %v842 = vadd.f32 %v822, %v514
    %v843 = vadd.f32 %v831, %v518
    %v844 = vadd.f32 %v840, %v522
    %v845 = vlaneseq
    %v846 = vshrl.u32 %v845, 7
    %v847 = vsub.s32 2, %v846
    %v848 = vrot.slane %v179, %v847
    %v849 = vlaneseq
    %v850 = vshrl.u32 %v849, 7
    %v851 = vsub.s32 2, %v850
    %v852 = vrot.slane %v180, %v851
    %v853 = vlaneseq
    %v854 = vshrl.u32 %v853, 7
    %v855 = vsub.s32 2, %v854
    %v856 = vrot.slane %v181, %v855
    %v857 = vlaneseq
    %v858 = vshrl.u32 %v857, 7
    %v859 = vsub.s32 2, %v858
    %v860 = vrot.slane %v182, %v859
    %v861 = vmul.f32 %v848, %v107
    %v862 = vmul.f32 %v852, %v108
    %v863 = vmul.f32 %v856, %v109
    %v864 = vmul.f32 %v860, %v110
    %v865 = vmul.f32 %v848, %v111
    %v866 = vmul.f32 %v852, %v112
    %v867 = vmul.f32 %v856, %v113
    %v868 = vmul.f32 %v860, %v114
    %v869 = vmul.f32 %v848, %v115
    %v870 = vmul.f32 %v852, %v116
    %v871 = vmul.f32 %v856, %v117
    %v872 = vmul.f32 %v860, %v118
    %v873 = vmul.f32 %v848, %v119
    %v874 = vmul.f32 %v852, %v120
    %v875 = vmul.f32 %v856, %v121
    %v876 = vmul.f32 %v860, %v122
    %v877 = vadd.f32 %v861, %v123
    %v878 = vadd.f32 %v862, %v124
    %v879 = vadd.f32 %v863, %v125
    %v880 = vadd.f32 %v864, %v126
    %v881 = vadd.f32 %v865, %v127
    %v882 = vadd.f32 %v866, %v128
    %v883 = vadd.f32 %v867, %v129
    %v884 = vadd.f32 %v868, %v130
    %v885 = vadd.f32 %v869, %v131
    %v886 = vadd.f32 %v870, %v132
    %v887 = vadd.f32 %v871, %v133
    %v888 = vadd.f32 %v872, %v134
    %v889 = vadd.f32 %v873, %v135
    %v890 = vadd.f32 %v874, %v136
    %v891 = vadd.f32 %v875, %v137
    %v892 = vadd.f32 %v876, %v138
    %v893 = vmax.f32 %v877, 0.0
    %v894 = vmax.f32 %v878, 0.0
    %v895 = vmax.f32 %v879, 0.0
    %v896 = vmax.f32 %v880, 0.0
    %v897 = vmax.f32 %v881, 0.0
    %v898 = vmax.f32 %v882, 0.0
    %v899 = vmax.f32 %v883, 0.0
    %v900 = vmax.f32 %v884, 0.0
    %v901 = vmax.f32 %v885, 0.0
    %v902 = vmax.f32 %v886, 0.0
    %v903 = vmax.f32 %v887, 0.0
    %v904 = vmax.f32 %v888, 0.0
    %v905 = vmax.f32 %v889, 0.0
    %v906 = vmax.f32 %v890, 0.0
    %v907 = vmax.f32 %v891, 0.0
    %v908 = vmax.f32 %v892, 0.0
    %909 = vmatprep.subr.mxu0 0.0
    %910 = vmatpush1.msra.mxu0 0.0
    %911 = vmatprep.subr.mxu0 0.0
    %912 = vmatpush1.msra.mxu0 0.0
    %913 = vmatprep.subr.mxu0 0.0
    %914 = vmatpush1.msra.mxu0 0.0
    %915 = vmatprep.subr.mxu0 0.0
    %916 = vmatpush1.msra.mxu0 0.0
    %917 = vmatprep.subr.mxu0 0.0
    %918 = vmatpush1.msra.mxu0 0.0
    %919 = vmatprep.subr.mxu0 0.0
    %920 = vmatpush1.msra.mxu0 0.0
    %921 = vmatprep.subr.mxu0 0.0
    %922 = vmatpush1.msra.mxu0 0.0
    %923 = vmatprep.subr.mxu0 0.0
    %924 = vmatpush1.msra.mxu0 0.0
    %925 = vmatprep.subr.mxu0 0.0
    %926 = vmatpush1.msra.mxu0 0.0
    %927 = vmatprep.subr.mxu0 0.0
    %928 = vmatpush1.msra.mxu0 0.0
    %929 = vmatprep.subr.mxu0 0.0
    %930 = vmatpush1.msra.mxu0 0.0
    %931 = vmatprep.subr.mxu0 0.0
    %932 = vmatpush1.msra.mxu0 0.0
    %933 = vmatprep.subr.mxu0 %v906
    %934 = vmatpush1.msra.mxu0 %v905
    %935 = vmatprep.subr.mxu0 %v902
    %936 = vmatpush1.msra.mxu0 %v901
    %937 = vmatprep.subr.mxu0 %v898
    %938 = vmatpush1.msra.mxu0 %v897
    %939 = vmatprep.subr.mxu0 %v894
    %940 = vmatpush1.msra.mxu0 %v893
    %941 = vmatprep.subr.mxu0 0.0
    %942 = vmatpush2.msra.mxu0 0.0
    %943 = vmatprep.subr.mxu0 0.0
    %944 = vmatpush2.msra.mxu0 0.0
    %945 = vmatprep.subr.mxu0 0.0
    %946 = vmatpush2.msra.mxu0 0.0
    %947 = vmatprep.subr.mxu0 0.0
    %948 = vmatpush2.msra.mxu0 0.0
    %949 = vmatprep.subr.mxu0 0.0
    %950 = vmatpush2.msra.mxu0 0.0
    %951 = vmatprep.subr.mxu0 0.0
    %952 = vmatpush2.msra.mxu0 0.0
    %953 = vmatprep.subr.mxu0 0.0
    %954 = vmatpush2.msra.mxu0 0.0
    %955 = vmatprep.subr.mxu0 0.0
    %956 = vmatpush2.msra.mxu0 0.0
    %957 = vmatprep.subr.mxu0 0.0
    %958 = vmatpush2.msra.mxu0 0.0
    %959 = vmatprep.subr.mxu0 0.0
    %960 = vmatpush2.msra.mxu0 0.0
    %961 = vmatprep.subr.mxu0 0.0
    %962 = vmatpush2.msra.mxu0 0.0
    %963 = vmatprep.subr.mxu0 0.0
    %964 = vmatpush2.msra.mxu0 0.0
    %965 = vmatprep.subr.mxu0 0.0
    %966 = vmatpush2.msra.mxu0 0.0
    %967 = vmatprep.subr.mxu0 0.0
    %968 = vmatpush2.msra.mxu0 0.0
    %969 = vmatprep.subr.mxu0 0.0
    %970 = vmatpush2.msra.mxu0 0.0
    %971 = vmatprep.subr.mxu0 0.0
    %972 = vmatpush2.msra.mxu0 0.0
    %973 = vmatprep.mubr.f32.mxu0 0.0
    %974 = vmatmul.mubr.f32.gmra.mxu0 %v249
    %v975 = vpop.f32.mrf.mxu0
    %v976 = vadd.f32 %v143, %v975
    %v977 = vpop.f32.mrf.mxu0
    %v978 = vadd.f32 %v144, %v977
    %979 = vmatprep.mubr.f32.mxu0 0.0
    %980 = vmatmul.mubr.f32.gmra.mxu0 %v252
    %v981 = vpop.f32.mrf.mxu0
    %v982 = vadd.f32 %v147, %v981
    %v983 = vpop.f32.mrf.mxu0
    %v984 = vadd.f32 %v148, %v983
    %985 = vmatprep.mubr.f32.mxu0 0.0
    %986 = vmatmul.mubr.f32.gmra.mxu0 %v255
    %v987 = vpop.f32.mrf.mxu0
    %v988 = vadd.f32 %v151, %v987
    %v989 = vpop.f32.mrf.mxu0
    %v990 = vadd.f32 %v152, %v989
    %991 = vmatprep.mubr.f32.mxu0 0.0
    %992 = vmatmul.mubr.f32.gmra.mxu0 %v258
    %v993 = vpop.f32.mrf.mxu0
    %v994 = vadd.f32 %v155, %v993
    %v995 = vpop.f32.mrf.mxu0
    %v996 = vadd.f32 %v156, %v995
    %997 = vdwg.mxu0
    %998 = vmatprep.subr.mxu0 0.0
    %999 = vmatpush1.msra.mxu0 0.0
    %1000 = vmatprep.subr.mxu0 0.0
    %1001 = vmatpush1.msra.mxu0 0.0
    %1002 = vmatprep.subr.mxu0 0.0
    %1003 = vmatpush1.msra.mxu0 0.0
    %1004 = vmatprep.subr.mxu0 0.0
    %1005 = vmatpush1.msra.mxu0 0.0
    %1006 = vmatprep.subr.mxu0 0.0
    %1007 = vmatpush1.msra.mxu0 0.0
    %1008 = vmatprep.subr.mxu0 0.0
    %1009 = vmatpush1.msra.mxu0 0.0
    %1010 = vmatprep.subr.mxu0 0.0
    %1011 = vmatpush1.msra.mxu0 0.0
    %1012 = vmatprep.subr.mxu0 0.0
    %1013 = vmatpush1.msra.mxu0 0.0
    %1014 = vmatprep.subr.mxu0 0.0
    %1015 = vmatpush1.msra.mxu0 0.0
    %1016 = vmatprep.subr.mxu0 0.0
    %1017 = vmatpush1.msra.mxu0 0.0
    %1018 = vmatprep.subr.mxu0 0.0
    %1019 = vmatpush1.msra.mxu0 0.0
    %1020 = vmatprep.subr.mxu0 0.0
    %1021 = vmatpush1.msra.mxu0 0.0
    %1022 = vmatprep.subr.mxu0 %v908
    %1023 = vmatpush1.msra.mxu0 %v907
    %1024 = vmatprep.subr.mxu0 %v904
    %1025 = vmatpush1.msra.mxu0 %v903
    %1026 = vmatprep.subr.mxu0 %v900
    %1027 = vmatpush1.msra.mxu0 %v899
    %1028 = vmatprep.subr.mxu0 %v896
    %1029 = vmatpush1.msra.mxu0 %v895
    %1030 = vmatprep.subr.mxu0 0.0
    %1031 = vmatpush2.msra.mxu0 0.0
    %1032 = vmatprep.subr.mxu0 0.0
    %1033 = vmatpush2.msra.mxu0 0.0
    %1034 = vmatprep.subr.mxu0 0.0
    %1035 = vmatpush2.msra.mxu0 0.0
    %1036 = vmatprep.subr.mxu0 0.0
    %1037 = vmatpush2.msra.mxu0 0.0
    %1038 = vmatprep.subr.mxu0 0.0
    %1039 = vmatpush2.msra.mxu0 0.0
    %1040 = vmatprep.subr.mxu0 0.0
    %1041 = vmatpush2.msra.mxu0 0.0
    %1042 = vmatprep.subr.mxu0 0.0
    %1043 = vmatpush2.msra.mxu0 0.0
    %1044 = vmatprep.subr.mxu0 0.0
    %1045 = vmatpush2.msra.mxu0 0.0
    %1046 = vmatprep.subr.mxu0 0.0
    %1047 = vmatpush2.msra.mxu0 0.0
    %1048 = vmatprep.subr.mxu0 0.0
    %1049 = vmatpush2.msra.mxu0 0.0
    %1050 = vmatprep.subr.mxu0 0.0
    %1051 = vmatpush2.msra.mxu0 0.0
    %1052 = vmatprep.subr.mxu0 0.0
    %1053 = vmatpush2.msra.mxu0 0.0
    %1054 = vmatprep.subr.mxu0 0.0
    %1055 = vmatpush2.msra.mxu0 0.0
    %1056 = vmatprep.subr.mxu0 0.0
    %1057 = vmatpush2.msra.mxu0 0.0
    %1058 = vmatprep.subr.mxu0 0.0
    %1059 = vmatpush2.msra.mxu0 0.0
    %1060 = vmatprep.subr.mxu0 0.0
    %1061 = vmatpush2.msra.mxu0 0.0
    %1062 = vmatprep.mubr.f32.mxu0 0.0
    %1063 = vmatmul.mubr.f32.gmra.mxu0 %v249
    %v1064 = vpop.f32.mrf.mxu0
    %v1065 = vadd.f32 %v145, %v1064
    %v1066 = vpop.f32.mrf.mxu0
    %v1067 = vadd.f32 %v146, %v1066
    %1068 = vmatprep.mubr.f32.mxu0 0.0
    %1069 = vmatmul.mubr.f32.gmra.mxu0 %v252
    %v1070 = vpop.f32.mrf.mxu0
    %v1071 = vadd.f32 %v149, %v1070
    %v1072 = vpop.f32.mrf.mxu0
    %v1073 = vadd.f32 %v150, %v1072
    %1074 = vmatprep.mubr.f32.mxu0 0.0
    %1075 = vmatmul.mubr.f32.gmra.mxu0 %v255
    %v1076 = vpop.f32.mrf.mxu0
    %v1077 = vadd.f32 %v153, %v1076
    %v1078 = vpop.f32.mrf.mxu0
    %v1079 = vadd.f32 %v154, %v1078
    %1080 = vmatprep.mubr.f32.mxu0 0.0
    %1081 = vmatmul.mubr.f32.gmra.mxu0 %v258
    %v1082 = vpop.f32.mrf.mxu0
    %v1083 = vadd.f32 %v157, %v1082
    %v1084 = vpop.f32.mrf.mxu0
    %v1085 = vadd.f32 %v158, %v1084
    %1086 = vdwg.mxu0
    %v1087 = vmax.f32 %v976, 0.0
    %v1088 = vmax.f32 %v978, 0.0
    %v1089 = vmax.f32 %v1065, 0.0
    %v1090 = vmax.f32 %v1067, 0.0
    %v1091 = vmax.f32 %v982, 0.0
    %v1092 = vmax.f32 %v984, 0.0
    %v1093 = vmax.f32 %v1071, 0.0
    %v1094 = vmax.f32 %v1073, 0.0
    %v1095 = vmax.f32 %v988, 0.0
    %v1096 = vmax.f32 %v990, 0.0
    %v1097 = vmax.f32 %v1077, 0.0
    %v1098 = vmax.f32 %v1079, 0.0
    %v1099 = vmax.f32 %v994, 0.0
    %v1100 = vmax.f32 %v996, 0.0
    %v1101 = vmax.f32 %v1083, 0.0
    %v1102 = vmax.f32 %v1085, 0.0
    %v1103 = vmul.f32 %v159, %v1087
    %v1104 = vmul.f32 %v160, %v1088
    %v1105 = vmul.f32 %v161, %v1089
    %v1106 = vmul.f32 %v162, %v1090
    %v1107 = vmul.f32 %v163, %v1091
    %v1108 = vmul.f32 %v164, %v1092
    %v1109 = vmul.f32 %v165, %v1093
    %v1110 = vmul.f32 %v166, %v1094
    %v1111 = vmul.f32 %v167, %v1095
    %v1112 = vmul.f32 %v168, %v1096
    %v1113 = vmul.f32 %v169, %v1097
    %v1114 = vmul.f32 %v170, %v1098
    %v1115 = vmul.f32 %v171, %v1099
    %v1116 = vmul.f32 %v172, %v1100
    %v1117 = vmul.f32 %v173, %v1101
    %v1118 = vmul.f32 %v174, %v1102
    %v1119 = vadd.f32 %v1103, %v1107
    %v1120 = vadd.f32 %v1119, %v1111
    %v1121 = vadd.f32 %v1120, %v1115
    %v1122 = vrot.slane %v1121, 4
    %v1123 = vadd.f32 %v1121, %v1122
    %v1124 = vrot.slane %v1123, 2
    %v1125 = vadd.f32 %v1123, %v1124
    %v1126 = vrot.slane %v1125, 1
    %v1127 = vadd.f32 %v1125, %v1126
    %v1128 = vadd.f32 %v1104, %v1108
    %v1129 = vadd.f32 %v1128, %v1112
    %v1130 = vadd.f32 %v1129, %v1116
    %v1131 = vrot.slane %v1130, 4
    %v1132 = vadd.f32 %v1130, %v1131
    %v1133 = vrot.slane %v1132, 2
    %v1134 = vadd.f32 %v1132, %v1133
    %v1135 = vrot.slane %v1134, 1
    %v1136 = vadd.f32 %v1134, %v1135
    %v1137 = vadd.f32 %v1105, %v1109
    %v1138 = vadd.f32 %v1137, %v1113
    %v1139 = vadd.f32 %v1138, %v1117
    %v1140 = vrot.slane %v1139, 4
    %v1141 = vadd.f32 %v1139, %v1140
    %v1142 = vrot.slane %v1141, 2
    %v1143 = vadd.f32 %v1141, %v1142
    %v1144 = vrot.slane %v1143, 1
    %v1145 = vadd.f32 %v1143, %v1144
    %v1146 = vadd.f32 %v1106, %v1110
    %v1147 = vadd.f32 %v1146, %v1114
    %v1148 = vadd.f32 %v1147, %v1118
    %v1149 = vrot.slane %v1148, 4
    %v1150 = vadd.f32 %v1148, %v1149
    %v1151 = vrot.slane %v1150, 2
    %v1152 = vadd.f32 %v1150, %v1151
    %v1153 = vrot.slane %v1152, 1
    %v1154 = vadd.f32 %v1152, %v1153
    %v1155 = vadd.f32 %v1127, %v510
    %v1156 = vadd.f32 %v1136, %v514
    %v1157 = vadd.f32 %v1145, %v518
    %v1158 = vadd.f32 %v1154, %v522
    %v1159 = vlaneseq
    %v1160 = vshrl.u32 %v1159, 7
    %v1161 = vsub.s32 3, %v1160
    %v1162 = vrot.slane %v179, %v1161
    %v1163 = vlaneseq
    %v1164 = vshrl.u32 %v1163, 7
    %v1165 = vsub.s32 3, %v1164
    %v1166 = vrot.slane %v180, %v1165
    %v1167 = vlaneseq
    %v1168 = vshrl.u32 %v1167, 7
    %v1169 = vsub.s32 3, %v1168
    %v1170 = vrot.slane %v181, %v1169
    %v1171 = vlaneseq
    %v1172 = vshrl.u32 %v1171, 7
    %v1173 = vsub.s32 3, %v1172
    %v1174 = vrot.slane %v182, %v1173
    %v1175 = vmul.f32 %v1162, %v107
    %v1176 = vmul.f32 %v1166, %v108
    %v1177 = vmul.f32 %v1170, %v109
    %v1178 = vmul.f32 %v1174, %v110
    %v1179 = vmul.f32 %v1162, %v111
    %v1180 = vmul.f32 %v1166, %v112
    %v1181 = vmul.f32 %v1170, %v113
    %v1182 = vmul.f32 %v1174, %v114
    %v1183 = vmul.f32 %v1162, %v115
    %v1184 = vmul.f32 %v1166, %v116
    %v1185 = vmul.f32 %v1170, %v117
    %v1186 = vmul.f32 %v1174, %v118
    %v1187 = vmul.f32 %v1162, %v119
    %v1188 = vmul.f32 %v1166, %v120
    %v1189 = vmul.f32 %v1170, %v121
    %v1190 = vmul.f32 %v1174, %v122
    %v1191 = vadd.f32 %v1175, %v123
    %v1192 = vadd.f32 %v1176, %v124
    %v1193 = vadd.f32 %v1177, %v125
    %v1194 = vadd.f32 %v1178, %v126
    %v1195 = vadd.f32 %v1179, %v127
    %v1196 = vadd.f32 %v1180, %v128
    %v1197 = vadd.f32 %v1181, %v129
    %v1198 = vadd.f32 %v1182, %v130
    %v1199 = vadd.f32 %v1183, %v131
    %v1200 = vadd.f32 %v1184, %v132
    %v1201 = vadd.f32 %v1185, %v133
    %v1202 = vadd.f32 %v1186, %v134
    %v1203 = vadd.f32 %v1187, %v135
    %v1204 = vadd.f32 %v1188, %v136
    %v1205 = vadd.f32 %v1189, %v137
    %v1206 = vadd.f32 %v1190, %v138
    %v1207 = vmax.f32 %v1191, 0.0
    %v1208 = vmax.f32 %v1192, 0.0
    %v1209 = vmax.f32 %v1193, 0.0
    %v1210 = vmax.f32 %v1194, 0.0
    %v1211 = vmax.f32 %v1195, 0.0
    %v1212 = vmax.f32 %v1196, 0.0
    %v1213 = vmax.f32 %v1197, 0.0
    %v1214 = vmax.f32 %v1198, 0.0
    %v1215 = vmax.f32 %v1199, 0.0
    %v1216 = vmax.f32 %v1200, 0.0
    %v1217 = vmax.f32 %v1201, 0.0
    %v1218 = vmax.f32 %v1202, 0.0
    %v1219 = vmax.f32 %v1203, 0.0
    %v1220 = vmax.f32 %v1204, 0.0
    %v1221 = vmax.f32 %v1205, 0.0
    %v1222 = vmax.f32 %v1206, 0.0
    %1223 = vmatprep.subr.mxu0 0.0
    %1224 = vmatpush1.msra.mxu0 0.0
    %1225 = vmatprep.subr.mxu0 0.0
    %1226 = vmatpush1.msra.mxu0 0.0
    %1227 = vmatprep.subr.mxu0 0.0
    %1228 = vmatpush1.msra.mxu0 0.0
    %1229 = vmatprep.subr.mxu0 0.0
    %1230 = vmatpush1.msra.mxu0 0.0
    %1231 = vmatprep.subr.mxu0 0.0
    %1232 = vmatpush1.msra.mxu0 0.0
    %1233 = vmatprep.subr.mxu0 0.0
    %1234 = vmatpush1.msra.mxu0 0.0
    %1235 = vmatprep.subr.mxu0 0.0
    %1236 = vmatpush1.msra.mxu0 0.0
    %1237 = vmatprep.subr.mxu0 0.0
    %1238 = vmatpush1.msra.mxu0 0.0
    %1239 = vmatprep.subr.mxu0 0.0
    %1240 = vmatpush1.msra.mxu0 0.0
    %1241 = vmatprep.subr.mxu0 0.0
    %1242 = vmatpush1.msra.mxu0 0.0
    %1243 = vmatprep.subr.mxu0 0.0
    %1244 = vmatpush1.msra.mxu0 0.0
    %1245 = vmatprep.subr.mxu0 0.0
    %1246 = vmatpush1.msra.mxu0 0.0
    %1247 = vmatprep.subr.mxu0 %v1220
    %1248 = vmatpush1.msra.mxu0 %v1219
    %1249 = vmatprep.subr.mxu0 %v1216
    %1250 = vmatpush1.msra.mxu0 %v1215
    %1251 = vmatprep.subr.mxu0 %v1212
    %1252 = vmatpush1.msra.mxu0 %v1211
    %1253 = vmatprep.subr.mxu0 %v1208
    %1254 = vmatpush1.msra.mxu0 %v1207
    %1255 = vmatprep.subr.mxu0 0.0
    %1256 = vmatpush2.msra.mxu0 0.0
    %1257 = vmatprep.subr.mxu0 0.0
    %1258 = vmatpush2.msra.mxu0 0.0
    %1259 = vmatprep.subr.mxu0 0.0
    %1260 = vmatpush2.msra.mxu0 0.0
    %1261 = vmatprep.subr.mxu0 0.0
    %1262 = vmatpush2.msra.mxu0 0.0
    %1263 = vmatprep.subr.mxu0 0.0
    %1264 = vmatpush2.msra.mxu0 0.0
    %1265 = vmatprep.subr.mxu0 0.0
    %1266 = vmatpush2.msra.mxu0 0.0
    %1267 = vmatprep.subr.mxu0 0.0
    %1268 = vmatpush2.msra.mxu0 0.0
    %1269 = vmatprep.subr.mxu0 0.0
    %1270 = vmatpush2.msra.mxu0 0.0
    %1271 = vmatprep.subr.mxu0 0.0
    %1272 = vmatpush2.msra.mxu0 0.0
    %1273 = vmatprep.subr.mxu0 0.0
    %1274 = vmatpush2.msra.mxu0 0.0
    %1275 = vmatprep.subr.mxu0 0.0
    %1276 = vmatpush2.msra.mxu0 0.0
    %1277 = vmatprep.subr.mxu0 0.0
    %1278 = vmatpush2.msra.mxu0 0.0
    %1279 = vmatprep.subr.mxu0 0.0
    %1280 = vmatpush2.msra.mxu0 0.0
    %1281 = vmatprep.subr.mxu0 0.0
    %1282 = vmatpush2.msra.mxu0 0.0
    %1283 = vmatprep.subr.mxu0 0.0
    %1284 = vmatpush2.msra.mxu0 0.0
    %1285 = vmatprep.subr.mxu0 0.0
    %1286 = vmatpush2.msra.mxu0 0.0
    %1287 = vmatprep.mubr.f32.mxu0 0.0
    %1288 = vmatmul.mubr.f32.gmra.mxu0 %v249
    %v1289 = vpop.f32.mrf.mxu0
    %v1290 = vadd.f32 %v143, %v1289
    %v1291 = vpop.f32.mrf.mxu0
    %v1292 = vadd.f32 %v144, %v1291
    %1293 = vmatprep.mubr.f32.mxu0 0.0
    %1294 = vmatmul.mubr.f32.gmra.mxu0 %v252
    %v1295 = vpop.f32.mrf.mxu0
    %v1296 = vadd.f32 %v147, %v1295
    %v1297 = vpop.f32.mrf.mxu0
    %v1298 = vadd.f32 %v148, %v1297
    %1299 = vmatprep.mubr.f32.mxu0 0.0
    %1300 = vmatmul.mubr.f32.gmra.mxu0 %v255
    %v1301 = vpop.f32.mrf.mxu0
    %v1302 = vadd.f32 %v151, %v1301
    %v1303 = vpop.f32.mrf.mxu0
    %v1304 = vadd.f32 %v152, %v1303
    %1305 = vmatprep.mubr.f32.mxu0 0.0
    %1306 = vmatmul.mubr.f32.gmra.mxu0 %v258
    %v1307 = vpop.f32.mrf.mxu0
    %v1308 = vadd.f32 %v155, %v1307
    %v1309 = vpop.f32.mrf.mxu0
    %v1310 = vadd.f32 %v156, %v1309
    %1311 = vdwg.mxu0
    %1312 = vmatprep.subr.mxu0 0.0
    %1313 = vmatpush1.msra.mxu0 0.0
    %1314 = vmatprep.subr.mxu0 0.0
    %1315 = vmatpush1.msra.mxu0 0.0
    %1316 = vmatprep.subr.mxu0 0.0
    %1317 = vmatpush1.msra.mxu0 0.0
    %1318 = vmatprep.subr.mxu0 0.0
    %1319 = vmatpush1.msra.mxu0 0.0
    %1320 = vmatprep.subr.mxu0 0.0
    %1321 = vmatpush1.msra.mxu0 0.0
    %1322 = vmatprep.subr.mxu0 0.0
    %1323 = vmatpush1.msra.mxu0 0.0
    %1324 = vmatprep.subr.mxu0 0.0
    %1325 = vmatpush1.msra.mxu0 0.0
    %1326 = vmatprep.subr.mxu0 0.0
    %1327 = vmatpush1.msra.mxu0 0.0
    %1328 = vmatprep.subr.mxu0 0.0
    %1329 = vmatpush1.msra.mxu0 0.0
    %1330 = vmatprep.subr.mxu0 0.0
    %1331 = vmatpush1.msra.mxu0 0.0
    %1332 = vmatprep.subr.mxu0 0.0
    %1333 = vmatpush1.msra.mxu0 0.0
    %1334 = vmatprep.subr.mxu0 0.0
    %1335 = vmatpush1.msra.mxu0 0.0
    %1336 = vmatprep.subr.mxu0 %v1222
    %1337 = vmatpush1.msra.mxu0 %v1221
    %1338 = vmatprep.subr.mxu0 %v1218
    %1339 = vmatpush1.msra.mxu0 %v1217
    %1340 = vmatprep.subr.mxu0 %v1214
    %1341 = vmatpush1.msra.mxu0 %v1213
    %1342 = vmatprep.subr.mxu0 %v1210
    %1343 = vmatpush1.msra.mxu0 %v1209
    %1344 = vmatprep.subr.mxu0 0.0
    %1345 = vmatpush2.msra.mxu0 0.0
    %1346 = vmatprep.subr.mxu0 0.0
    %1347 = vmatpush2.msra.mxu0 0.0
    %1348 = vmatprep.subr.mxu0 0.0
    %1349 = vmatpush2.msra.mxu0 0.0
    %1350 = vmatprep.subr.mxu0 0.0
    %1351 = vmatpush2.msra.mxu0 0.0
    %1352 = vmatprep.subr.mxu0 0.0
    %1353 = vmatpush2.msra.mxu0 0.0
    %1354 = vmatprep.subr.mxu0 0.0
    %1355 = vmatpush2.msra.mxu0 0.0
    %1356 = vmatprep.subr.mxu0 0.0
    %1357 = vmatpush2.msra.mxu0 0.0
    %1358 = vmatprep.subr.mxu0 0.0
    %1359 = vmatpush2.msra.mxu0 0.0
    %1360 = vmatprep.subr.mxu0 0.0
    %1361 = vmatpush2.msra.mxu0 0.0
    %1362 = vmatprep.subr.mxu0 0.0
    %1363 = vmatpush2.msra.mxu0 0.0
    %1364 = vmatprep.subr.mxu0 0.0
    %1365 = vmatpush2.msra.mxu0 0.0
    %1366 = vmatprep.subr.mxu0 0.0
    %1367 = vmatpush2.msra.mxu0 0.0
    %1368 = vmatprep.subr.mxu0 0.0
    %1369 = vmatpush2.msra.mxu0 0.0
    %1370 = vmatprep.subr.mxu0 0.0
    %1371 = vmatpush2.msra.mxu0 0.0
    %1372 = vmatprep.subr.mxu0 0.0
    %1373 = vmatpush2.msra.mxu0 0.0
    %1374 = vmatprep.subr.mxu0 0.0
    %1375 = vmatpush2.msra.mxu0 0.0
    %1376 = vmatprep.mubr.f32.mxu0 0.0
    %1377 = vmatmul.mubr.f32.gmra.mxu0 %v249
    %v1378 = vpop.f32.mrf.mxu0
    %v1379 = vadd.f32 %v145, %v1378
    %v1380 = vpop.f32.mrf.mxu0
    %v1381 = vadd.f32 %v146, %v1380
    %1382 = vmatprep.mubr.f32.mxu0 0.0
    %1383 = vmatmul.mubr.f32.gmra.mxu0 %v252
    %v1384 = vpop.f32.mrf.mxu0
    %v1385 = vadd.f32 %v149, %v1384
    %v1386 = vpop.f32.mrf.mxu0
    %v1387 = vadd.f32 %v150, %v1386
    %1388 = vmatprep.mubr.f32.mxu0 0.0
    %1389 = vmatmul.mubr.f32.gmra.mxu0 %v255
    %v1390 = vpop.f32.mrf.mxu0
    %v1391 = vadd.f32 %v153, %v1390
    %v1392 = vpop.f32.mrf.mxu0
    %v1393 = vadd.f32 %v154, %v1392
    %1394 = vmatprep.mubr.f32.mxu0 0.0
    %1395 = vmatmul.mubr.f32.gmra.mxu0 %v258
    %v1396 = vpop.f32.mrf.mxu0
    %v1397 = vadd.f32 %v157, %v1396
    %v1398 = vpop.f32.mrf.mxu0
    %v1399 = vadd.f32 %v158, %v1398
    %1400 = vdwg.mxu0
    %v1401 = vmax.f32 %v1290, 0.0
    %v1402 = vmax.f32 %v1292, 0.0
    %v1403 = vmax.f32 %v1379, 0.0
    %v1404 = vmax.f32 %v1381, 0.0
    %v1405 = vmax.f32 %v1296, 0.0
    %v1406 = vmax.f32 %v1298, 0.0
    %v1407 = vmax.f32 %v1385, 0.0
    %v1408 = vmax.f32 %v1387, 0.0
    %v1409 = vmax.f32 %v1302, 0.0
    %v1410 = vmax.f32 %v1304, 0.0
    %v1411 = vmax.f32 %v1391, 0.0
    %v1412 = vmax.f32 %v1393, 0.0
    %v1413 = vmax.f32 %v1308, 0.0
    %v1414 = vmax.f32 %v1310, 0.0
    %v1415 = vmax.f32 %v1397, 0.0
    %v1416 = vmax.f32 %v1399, 0.0
    %v1417 = vmul.f32 %v159, %v1401
    %v1418 = vmul.f32 %v160, %v1402
    %v1419 = vmul.f32 %v161, %v1403
    %v1420 = vmul.f32 %v162, %v1404
    %v1421 = vmul.f32 %v163, %v1405
    %v1422 = vmul.f32 %v164, %v1406
    %v1423 = vmul.f32 %v165, %v1407
    %v1424 = vmul.f32 %v166, %v1408
    %v1425 = vmul.f32 %v167, %v1409
    %v1426 = vmul.f32 %v168, %v1410
    %v1427 = vmul.f32 %v169, %v1411
    %v1428 = vmul.f32 %v170, %v1412
    %v1429 = vmul.f32 %v171, %v1413
    %v1430 = vmul.f32 %v172, %v1414
    %v1431 = vmul.f32 %v173, %v1415
    %v1432 = vmul.f32 %v174, %v1416
    %v1433 = vadd.f32 %v1417, %v1421
    %v1434 = vadd.f32 %v1433, %v1425
    %v1435 = vadd.f32 %v1434, %v1429
    %v1436 = vrot.slane %v1435, 4
    %v1437 = vadd.f32 %v1435, %v1436
    %v1438 = vrot.slane %v1437, 2
    %v1439 = vadd.f32 %v1437, %v1438
    %v1440 = vrot.slane %v1439, 1
    %v1441 = vadd.f32 %v1439, %v1440
    %v1442 = vadd.f32 %v1418, %v1422
    %v1443 = vadd.f32 %v1442, %v1426
    %v1444 = vadd.f32 %v1443, %v1430
    %v1445 = vrot.slane %v1444, 4
    %v1446 = vadd.f32 %v1444, %v1445
    %v1447 = vrot.slane %v1446, 2
    %v1448 = vadd.f32 %v1446, %v1447
    %v1449 = vrot.slane %v1448, 1
    %v1450 = vadd.f32 %v1448, %v1449
    %v1451 = vadd.f32 %v1419, %v1423
    %v1452 = vadd.f32 %v1451, %v1427
    %v1453 = vadd.f32 %v1452, %v1431
    %v1454 = vrot.slane %v1453, 4
    %v1455 = vadd.f32 %v1453, %v1454
    %v1456 = vrot.slane %v1455, 2
    %v1457 = vadd.f32 %v1455, %v1456
    %v1458 = vrot.slane %v1457, 1
    %v1459 = vadd.f32 %v1457, %v1458
    %v1460 = vadd.f32 %v1420, %v1424
    %v1461 = vadd.f32 %v1460, %v1428
    %v1462 = vadd.f32 %v1461, %v1432
    %v1463 = vrot.slane %v1462, 4
    %v1464 = vadd.f32 %v1462, %v1463
    %v1465 = vrot.slane %v1464, 2
    %v1466 = vadd.f32 %v1464, %v1465
    %v1467 = vrot.slane %v1466, 1
    %v1468 = vadd.f32 %v1466, %v1467
    %v1469 = vadd.f32 %v1441, %v510
    %v1470 = vadd.f32 %v1450, %v514
    %v1471 = vadd.f32 %v1459, %v518
    %v1472 = vadd.f32 %v1468, %v522
    %v1473 = vlaneseq
    %v1474 = vshrl.u32 %v1473, 7
    %v1475 = vsub.s32 4, %v1474
    %v1476 = vrot.slane %v179, %v1475
    %v1477 = vlaneseq
    %v1478 = vshrl.u32 %v1477, 7
    %v1479 = vsub.s32 4, %v1478
    %v1480 = vrot.slane %v180, %v1479
    %v1481 = vlaneseq
    %v1482 = vshrl.u32 %v1481, 7
    %v1483 = vsub.s32 4, %v1482
    %v1484 = vrot.slane %v181, %v1483
    %v1485 = vlaneseq
    %v1486 = vshrl.u32 %v1485, 7
    %v1487 = vsub.s32 4, %v1486
    %v1488 = vrot.slane %v182, %v1487
    %v1489 = vmul.f32 %v1476, %v107
    %v1490 = vmul.f32 %v1480, %v108
    %v1491 = vmul.f32 %v1484, %v109
    %v1492 = vmul.f32 %v1488, %v110
    %v1493 = vmul.f32 %v1476, %v111
    %v1494 = vmul.f32 %v1480, %v112
    %v1495 = vmul.f32 %v1484, %v113
    %v1496 = vmul.f32 %v1488, %v114
    %v1497 = vmul.f32 %v1476, %v115
    %v1498 = vmul.f32 %v1480, %v116
    %v1499 = vmul.f32 %v1484, %v117
    %v1500 = vmul.f32 %v1488, %v118
    %v1501 = vmul.f32 %v1476, %v119
    %v1502 = vmul.f32 %v1480, %v120
    %v1503 = vmul.f32 %v1484, %v121
    %v1504 = vmul.f32 %v1488, %v122
    %v1505 = vadd.f32 %v1489, %v123
    %v1506 = vadd.f32 %v1490, %v124
    %v1507 = vadd.f32 %v1491, %v125
    %v1508 = vadd.f32 %v1492, %v126
    %v1509 = vadd.f32 %v1493, %v127
    %v1510 = vadd.f32 %v1494, %v128
    %v1511 = vadd.f32 %v1495, %v129
    %v1512 = vadd.f32 %v1496, %v130
    %v1513 = vadd.f32 %v1497, %v131
    %v1514 = vadd.f32 %v1498, %v132
    %v1515 = vadd.f32 %v1499, %v133
    %v1516 = vadd.f32 %v1500, %v134
    %v1517 = vadd.f32 %v1501, %v135
    %v1518 = vadd.f32 %v1502, %v136
    %v1519 = vadd.f32 %v1503, %v137
    %v1520 = vadd.f32 %v1504, %v138
    %v1521 = vmax.f32 %v1505, 0.0
    %v1522 = vmax.f32 %v1506, 0.0
    %v1523 = vmax.f32 %v1507, 0.0
    %v1524 = vmax.f32 %v1508, 0.0
    %v1525 = vmax.f32 %v1509, 0.0
    %v1526 = vmax.f32 %v1510, 0.0
    %v1527 = vmax.f32 %v1511, 0.0
    %v1528 = vmax.f32 %v1512, 0.0
    %v1529 = vmax.f32 %v1513, 0.0
    %v1530 = vmax.f32 %v1514, 0.0
    %v1531 = vmax.f32 %v1515, 0.0
    %v1532 = vmax.f32 %v1516, 0.0
    %v1533 = vmax.f32 %v1517, 0.0
    %v1534 = vmax.f32 %v1518, 0.0
    %v1535 = vmax.f32 %v1519, 0.0
    %v1536 = vmax.f32 %v1520, 0.0
    %1537 = vmatprep.subr.mxu0 0.0
    %1538 = vmatpush1.msra.mxu0 0.0
    %1539 = vmatprep.subr.mxu0 0.0
    %1540 = vmatpush1.msra.mxu0 0.0
    %1541 = vmatprep.subr.mxu0 0.0
    %1542 = vmatpush1.msra.mxu0 0.0
    %1543 = vmatprep.subr.mxu0 0.0
    %1544 = vmatpush1.msra.mxu0 0.0
    %1545 = vmatprep.subr.mxu0 0.0
    %1546 = vmatpush1.msra.mxu0 0.0
    %1547 = vmatprep.subr.mxu0 0.0
    %1548 = vmatpush1.msra.mxu0 0.0
    %1549 = vmatprep.subr.mxu0 0.0
    %1550 = vmatpush1.msra.mxu0 0.0
    %1551 = vmatprep.subr.mxu0 0.0
    %1552 = vmatpush1.msra.mxu0 0.0
    %1553 = vmatprep.subr.mxu0 0.0
    %1554 = vmatpush1.msra.mxu0 0.0
    %1555 = vmatprep.subr.mxu0 0.0
    %1556 = vmatpush1.msra.mxu0 0.0
    %1557 = vmatprep.subr.mxu0 0.0
    %1558 = vmatpush1.msra.mxu0 0.0
    %1559 = vmatprep.subr.mxu0 0.0
    %1560 = vmatpush1.msra.mxu0 0.0
    %1561 = vmatprep.subr.mxu0 %v1534
    %1562 = vmatpush1.msra.mxu0 %v1533
    %1563 = vmatprep.subr.mxu0 %v1530
    %1564 = vmatpush1.msra.mxu0 %v1529
    %1565 = vmatprep.subr.mxu0 %v1526
    %1566 = vmatpush1.msra.mxu0 %v1525
    %1567 = vmatprep.subr.mxu0 %v1522
    %1568 = vmatpush1.msra.mxu0 %v1521
    %1569 = vmatprep.subr.mxu0 0.0
    %1570 = vmatpush2.msra.mxu0 0.0
    %1571 = vmatprep.subr.mxu0 0.0
    %1572 = vmatpush2.msra.mxu0 0.0
    %1573 = vmatprep.subr.mxu0 0.0
    %1574 = vmatpush2.msra.mxu0 0.0
    %1575 = vmatprep.subr.mxu0 0.0
    %1576 = vmatpush2.msra.mxu0 0.0
    %1577 = vmatprep.subr.mxu0 0.0
    %1578 = vmatpush2.msra.mxu0 0.0
    %1579 = vmatprep.subr.mxu0 0.0
    %1580 = vmatpush2.msra.mxu0 0.0
    %1581 = vmatprep.subr.mxu0 0.0
    %1582 = vmatpush2.msra.mxu0 0.0
    %1583 = vmatprep.subr.mxu0 0.0
    %1584 = vmatpush2.msra.mxu0 0.0
    %1585 = vmatprep.subr.mxu0 0.0
    %1586 = vmatpush2.msra.mxu0 0.0
    %1587 = vmatprep.subr.mxu0 0.0
    %1588 = vmatpush2.msra.mxu0 0.0
    %1589 = vmatprep.subr.mxu0 0.0
    %1590 = vmatpush2.msra.mxu0 0.0
    %1591 = vmatprep.subr.mxu0 0.0
    %1592 = vmatpush2.msra.mxu0 0.0
    %1593 = vmatprep.subr.mxu0 0.0
    %1594 = vmatpush2.msra.mxu0 0.0
    %1595 = vmatprep.subr.mxu0 0.0
    %1596 = vmatpush2.msra.mxu0 0.0
    %1597 = vmatprep.subr.mxu0 0.0
    %1598 = vmatpush2.msra.mxu0 0.0
    %1599 = vmatprep.subr.mxu0 0.0
    %1600 = vmatpush2.msra.mxu0 0.0
    %1601 = vmatprep.mubr.f32.mxu0 0.0
    %1602 = vmatmul.mubr.f32.gmra.mxu0 %v249
    %v1603 = vpop.f32.mrf.mxu0
    %v1604 = vadd.f32 %v143, %v1603
    %v1605 = vpop.f32.mrf.mxu0
    %v1606 = vadd.f32 %v144, %v1605
    %1607 = vmatprep.mubr.f32.mxu0 0.0
    %1608 = vmatmul.mubr.f32.gmra.mxu0 %v252
    %v1609 = vpop.f32.mrf.mxu0
    %v1610 = vadd.f32 %v147, %v1609
    %v1611 = vpop.f32.mrf.mxu0
    %v1612 = vadd.f32 %v148, %v1611
    %1613 = vmatprep.mubr.f32.mxu0 0.0
    %1614 = vmatmul.mubr.f32.gmra.mxu0 %v255
    %v1615 = vpop.f32.mrf.mxu0
    %v1616 = vadd.f32 %v151, %v1615
    %v1617 = vpop.f32.mrf.mxu0
    %v1618 = vadd.f32 %v152, %v1617
    %1619 = vmatprep.mubr.f32.mxu0 0.0
    %1620 = vmatmul.mubr.f32.gmra.mxu0 %v258
    %v1621 = vpop.f32.mrf.mxu0
    %v1622 = vadd.f32 %v155, %v1621
    %v1623 = vpop.f32.mrf.mxu0
    %v1624 = vadd.f32 %v156, %v1623
    %1625 = vdwg.mxu0
    %1626 = vmatprep.subr.mxu0 0.0
    %1627 = vmatpush1.msra.mxu0 0.0
    %1628 = vmatprep.subr.mxu0 0.0
    %1629 = vmatpush1.msra.mxu0 0.0
    %1630 = vmatprep.subr.mxu0 0.0
    %1631 = vmatpush1.msra.mxu0 0.0
    %1632 = vmatprep.subr.mxu0 0.0
    %1633 = vmatpush1.msra.mxu0 0.0
    %1634 = vmatprep.subr.mxu0 0.0
    %1635 = vmatpush1.msra.mxu0 0.0
    %1636 = vmatprep.subr.mxu0 0.0
    %1637 = vmatpush1.msra.mxu0 0.0
    %1638 = vmatprep.subr.mxu0 0.0
    %1639 = vmatpush1.msra.mxu0 0.0
    %1640 = vmatprep.subr.mxu0 0.0
    %1641 = vmatpush1.msra.mxu0 0.0
    %1642 = vmatprep.subr.mxu0 0.0
    %1643 = vmatpush1.msra.mxu0 0.0
    %1644 = vmatprep.subr.mxu0 0.0
    %1645 = vmatpush1.msra.mxu0 0.0
    %1646 = vmatprep.subr.mxu0 0.0
    %1647 = vmatpush1.msra.mxu0 0.0
    %1648 = vmatprep.subr.mxu0 0.0
    %1649 = vmatpush1.msra.mxu0 0.0
    %1650 = vmatprep.subr.mxu0 %v1536
    %1651 = vmatpush1.msra.mxu0 %v1535
    %1652 = vmatprep.subr.mxu0 %v1532
    %1653 = vmatpush1.msra.mxu0 %v1531
    %1654 = vmatprep.subr.mxu0 %v1528
    %1655 = vmatpush1.msra.mxu0 %v1527
    %1656 = vmatprep.subr.mxu0 %v1524
    %1657 = vmatpush1.msra.mxu0 %v1523
    %1658 = vmatprep.subr.mxu0 0.0
    %1659 = vmatpush2.msra.mxu0 0.0
    %1660 = vmatprep.subr.mxu0 0.0
    %1661 = vmatpush2.msra.mxu0 0.0
    %1662 = vmatprep.subr.mxu0 0.0
    %1663 = vmatpush2.msra.mxu0 0.0
    %1664 = vmatprep.subr.mxu0 0.0
    %1665 = vmatpush2.msra.mxu0 0.0
    %1666 = vmatprep.subr.mxu0 0.0
    %1667 = vmatpush2.msra.mxu0 0.0
    %1668 = vmatprep.subr.mxu0 0.0
    %1669 = vmatpush2.msra.mxu0 0.0
    %1670 = vmatprep.subr.mxu0 0.0
    %1671 = vmatpush2.msra.mxu0 0.0
    %1672 = vmatprep.subr.mxu0 0.0
    %1673 = vmatpush2.msra.mxu0 0.0
    %1674 = vmatprep.subr.mxu0 0.0
    %1675 = vmatpush2.msra.mxu0 0.0
    %1676 = vmatprep.subr.mxu0 0.0
    %1677 = vmatpush2.msra.mxu0 0.0
    %1678 = vmatprep.subr.mxu0 0.0
    %1679 = vmatpush2.msra.mxu0 0.0
    %1680 = vmatprep.subr.mxu0 0.0
    %1681 = vmatpush2.msra.mxu0 0.0
    %1682 = vmatprep.subr.mxu0 0.0
    %1683 = vmatpush2.msra.mxu0 0.0
    %1684 = vmatprep.subr.mxu0 0.0
    %1685 = vmatpush2.msra.mxu0 0.0
    %1686 = vmatprep.subr.mxu0 0.0
    %1687 = vmatpush2.msra.mxu0 0.0
    %1688 = vmatprep.subr.mxu0 0.0
    %1689 = vmatpush2.msra.mxu0 0.0
    %1690 = vmatprep.mubr.f32.mxu0 0.0
    %1691 = vmatmul.mubr.f32.gmra.mxu0 %v249
    %v1692 = vpop.f32.mrf.mxu0
    %v1693 = vadd.f32 %v145, %v1692
    %v1694 = vpop.f32.mrf.mxu0
    %v1695 = vadd.f32 %v146, %v1694
    %1696 = vmatprep.mubr.f32.mxu0 0.0
    %1697 = vmatmul.mubr.f32.gmra.mxu0 %v252
    %v1698 = vpop.f32.mrf.mxu0
    %v1699 = vadd.f32 %v149, %v1698
    %v1700 = vpop.f32.mrf.mxu0
    %v1701 = vadd.f32 %v150, %v1700
    %1702 = vmatprep.mubr.f32.mxu0 0.0
    %1703 = vmatmul.mubr.f32.gmra.mxu0 %v255
    %v1704 = vpop.f32.mrf.mxu0
    %v1705 = vadd.f32 %v153, %v1704
    %v1706 = vpop.f32.mrf.mxu0
    %v1707 = vadd.f32 %v154, %v1706
    %1708 = vmatprep.mubr.f32.mxu0 0.0
    %1709 = vmatmul.mubr.f32.gmra.mxu0 %v258
    %v1710 = vpop.f32.mrf.mxu0
    %v1711 = vadd.f32 %v157, %v1710
    %v1712 = vpop.f32.mrf.mxu0
    %v1713 = vadd.f32 %v158, %v1712
    %1714 = vdwg.mxu0
    %v1715 = vmax.f32 %v1604, 0.0
    %v1716 = vmax.f32 %v1606, 0.0
    %v1717 = vmax.f32 %v1693, 0.0
    %v1718 = vmax.f32 %v1695, 0.0
    %v1719 = vmax.f32 %v1610, 0.0
    %v1720 = vmax.f32 %v1612, 0.0
    %v1721 = vmax.f32 %v1699, 0.0
    %v1722 = vmax.f32 %v1701, 0.0
    %v1723 = vmax.f32 %v1616, 0.0
    %v1724 = vmax.f32 %v1618, 0.0
    %v1725 = vmax.f32 %v1705, 0.0
    %v1726 = vmax.f32 %v1707, 0.0
    %v1727 = vmax.f32 %v1622, 0.0
    %v1728 = vmax.f32 %v1624, 0.0
    %v1729 = vmax.f32 %v1711, 0.0
    %v1730 = vmax.f32 %v1713, 0.0
    %v1731 = vmul.f32 %v159, %v1715
    %v1732 = vmul.f32 %v160, %v1716
    %v1733 = vmul.f32 %v161, %v1717
    %v1734 = vmul.f32 %v162, %v1718
    %v1735 = vmul.f32 %v163, %v1719
    %v1736 = vmul.f32 %v164, %v1720
    %v1737 = vmul.f32 %v165, %v1721
    %v1738 = vmul.f32 %v166, %v1722
    %v1739 = vmul.f32 %v167, %v1723
    %v1740 = vmul.f32 %v168, %v1724
    %v1741 = vmul.f32 %v169, %v1725
    %v1742 = vmul.f32 %v170, %v1726
    %v1743 = vmul.f32 %v171, %v1727
    %v1744 = vmul.f32 %v172, %v1728
    %v1745 = vmul.f32 %v173, %v1729
    %v1746 = vmul.f32 %v174, %v1730
    %v1747 = vadd.f32 %v1731, %v1735
    %v1748 = vadd.f32 %v1747, %v1739
    %v1749 = vadd.f32 %v1748, %v1743
    %v1750 = vrot.slane %v1749, 4
    %v1751 = vadd.f32 %v1749, %v1750
    %v1752 = vrot.slane %v1751, 2
    %v1753 = vadd.f32 %v1751, %v1752
    %v1754 = vrot.slane %v1753, 1
    %v1755 = vadd.f32 %v1753, %v1754
    %v1756 = vadd.f32 %v1732, %v1736
    %v1757 = vadd.f32 %v1756, %v1740
    %v1758 = vadd.f32 %v1757, %v1744
    %v1759 = vrot.slane %v1758, 4
    %v1760 = vadd.f32 %v1758, %v1759
    %v1761 = vrot.slane %v1760, 2
    %v1762 = vadd.f32 %v1760, %v1761
    %v1763 = vrot.slane %v1762, 1
    %v1764 = vadd.f32 %v1762, %v1763
    %v1765 = vadd.f32 %v1733, %v1737
    %v1766 = vadd.f32 %v1765, %v1741
    %v1767 = vadd.f32 %v1766, %v1745
    %v1768 = vrot.slane %v1767, 4
    %v1769 = vadd.f32 %v1767, %v1768
    %v1770 = vrot.slane %v1769, 2
    %v1771 = vadd.f32 %v1769, %v1770
    %v1772 = vrot.slane %v1771, 1
    %v1773 = vadd.f32 %v1771, %v1772
    %v1774 = vadd.f32 %v1734, %v1738
    %v1775 = vadd.f32 %v1774, %v1742
    %v1776 = vadd.f32 %v1775, %v1746
    %v1777 = vrot.slane %v1776, 4
    %v1778 = vadd.f32 %v1776, %v1777
    %v1779 = vrot.slane %v1778, 2
    %v1780 = vadd.f32 %v1778, %v1779
    %v1781 = vrot.slane %v1780, 1
    %v1782 = vadd.f32 %v1780, %v1781
    %v1783 = vadd.f32 %v1755, %v510
    %v1784 = vadd.f32 %v1764, %v514
    %v1785 = vadd.f32 %v1773, %v518
    %v1786 = vadd.f32 %v1782, %v522
    %v1787 = vlaneseq
    %v1788 = vshrl.u32 %v1787, 7
    %v1789 = vsub.s32 5, %v1788
    %v1790 = vrot.slane %v179, %v1789
    %v1791 = vlaneseq
    %v1792 = vshrl.u32 %v1791, 7
    %v1793 = vsub.s32 5, %v1792
    %v1794 = vrot.slane %v180, %v1793
    %v1795 = vlaneseq
    %v1796 = vshrl.u32 %v1795, 7
    %v1797 = vsub.s32 5, %v1796
    %v1798 = vrot.slane %v181, %v1797
    %v1799 = vlaneseq
    %v1800 = vshrl.u32 %v1799, 7
    %v1801 = vsub.s32 5, %v1800
    %v1802 = vrot.slane %v182, %v1801
    %v1803 = vmul.f32 %v1790, %v107
    %v1804 = vmul.f32 %v1794, %v108
    %v1805 = vmul.f32 %v1798, %v109
    %v1806 = vmul.f32 %v1802, %v110
    %v1807 = vmul.f32 %v1790, %v111
    %v1808 = vmul.f32 %v1794, %v112
    %v1809 = vmul.f32 %v1798, %v113
    %v1810 = vmul.f32 %v1802, %v114
    %v1811 = vmul.f32 %v1790, %v115
    %v1812 = vmul.f32 %v1794, %v116
    %v1813 = vmul.f32 %v1798, %v117
    %v1814 = vmul.f32 %v1802, %v118
    %v1815 = vmul.f32 %v1790, %v119
    %v1816 = vmul.f32 %v1794, %v120
    %v1817 = vmul.f32 %v1798, %v121
    %v1818 = vmul.f32 %v1802, %v122
    %v1819 = vadd.f32 %v1803, %v123
    %v1820 = vadd.f32 %v1804, %v124
    %v1821 = vadd.f32 %v1805, %v125
    %v1822 = vadd.f32 %v1806, %v126
    %v1823 = vadd.f32 %v1807, %v127
    %v1824 = vadd.f32 %v1808, %v128
    %v1825 = vadd.f32 %v1809, %v129
    %v1826 = vadd.f32 %v1810, %v130
    %v1827 = vadd.f32 %v1811, %v131
    %v1828 = vadd.f32 %v1812, %v132
    %v1829 = vadd.f32 %v1813, %v133
    %v1830 = vadd.f32 %v1814, %v134
    %v1831 = vadd.f32 %v1815, %v135
    %v1832 = vadd.f32 %v1816, %v136
    %v1833 = vadd.f32 %v1817, %v137
    %v1834 = vadd.f32 %v1818, %v138
    %v1835 = vmax.f32 %v1819, 0.0
    %v1836 = vmax.f32 %v1820, 0.0
    %v1837 = vmax.f32 %v1821, 0.0
    %v1838 = vmax.f32 %v1822, 0.0
    %v1839 = vmax.f32 %v1823, 0.0
    %v1840 = vmax.f32 %v1824, 0.0
    %v1841 = vmax.f32 %v1825, 0.0
    %v1842 = vmax.f32 %v1826, 0.0
    %v1843 = vmax.f32 %v1827, 0.0
    %v1844 = vmax.f32 %v1828, 0.0
    %v1845 = vmax.f32 %v1829, 0.0
    %v1846 = vmax.f32 %v1830, 0.0
    %v1847 = vmax.f32 %v1831, 0.0
    %v1848 = vmax.f32 %v1832, 0.0
    %v1849 = vmax.f32 %v1833, 0.0
    %v1850 = vmax.f32 %v1834, 0.0
    %1851 = vmatprep.subr.mxu0 0.0
    %1852 = vmatpush1.msra.mxu0 0.0
    %1853 = vmatprep.subr.mxu0 0.0
    %1854 = vmatpush1.msra.mxu0 0.0
    %1855 = vmatprep.subr.mxu0 0.0
    %1856 = vmatpush1.msra.mxu0 0.0
    %1857 = vmatprep.subr.mxu0 0.0
    %1858 = vmatpush1.msra.mxu0 0.0
    %1859 = vmatprep.subr.mxu0 0.0
    %1860 = vmatpush1.msra.mxu0 0.0
    %1861 = vmatprep.subr.mxu0 0.0
    %1862 = vmatpush1.msra.mxu0 0.0
    %1863 = vmatprep.subr.mxu0 0.0
    %1864 = vmatpush1.msra.mxu0 0.0
    %1865 = vmatprep.subr.mxu0 0.0
    %1866 = vmatpush1.msra.mxu0 0.0
    %1867 = vmatprep.subr.mxu0 0.0
    %1868 = vmatpush1.msra.mxu0 0.0
    %1869 = vmatprep.subr.mxu0 0.0
    %1870 = vmatpush1.msra.mxu0 0.0
    %1871 = vmatprep.subr.mxu0 0.0
    %1872 = vmatpush1.msra.mxu0 0.0
    %1873 = vmatprep.subr.mxu0 0.0
    %1874 = vmatpush1.msra.mxu0 0.0
    %1875 = vmatprep.subr.mxu0 %v1848
    %1876 = vmatpush1.msra.mxu0 %v1847
    %1877 = vmatprep.subr.mxu0 %v1844
    %1878 = vmatpush1.msra.mxu0 %v1843
    %1879 = vmatprep.subr.mxu0 %v1840
    %1880 = vmatpush1.msra.mxu0 %v1839
    %1881 = vmatprep.subr.mxu0 %v1836
    %1882 = vmatpush1.msra.mxu0 %v1835
    %1883 = vmatprep.subr.mxu0 0.0
    %1884 = vmatpush2.msra.mxu0 0.0
    %1885 = vmatprep.subr.mxu0 0.0
    %1886 = vmatpush2.msra.mxu0 0.0
    %1887 = vmatprep.subr.mxu0 0.0
    %1888 = vmatpush2.msra.mxu0 0.0
    %1889 = vmatprep.subr.mxu0 0.0
    %1890 = vmatpush2.msra.mxu0 0.0
    %1891 = vmatprep.subr.mxu0 0.0
    %1892 = vmatpush2.msra.mxu0 0.0
    %1893 = vmatprep.subr.mxu0 0.0
    %1894 = vmatpush2.msra.mxu0 0.0
    %1895 = vmatprep.subr.mxu0 0.0
    %1896 = vmatpush2.msra.mxu0 0.0
    %1897 = vmatprep.subr.mxu0 0.0
    %1898 = vmatpush2.msra.mxu0 0.0
    %1899 = vmatprep.subr.mxu0 0.0
    %1900 = vmatpush2.msra.mxu0 0.0
    %1901 = vmatprep.subr.mxu0 0.0
    %1902 = vmatpush2.msra.mxu0 0.0
    %1903 = vmatprep.subr.mxu0 0.0
    %1904 = vmatpush2.msra.mxu0 0.0
    %1905 = vmatprep.subr.mxu0 0.0
    %1906 = vmatpush2.msra.mxu0 0.0
    %1907 = vmatprep.subr.mxu0 0.0
    %1908 = vmatpush2.msra.mxu0 0.0
    %1909 = vmatprep.subr.mxu0 0.0
    %1910 = vmatpush2.msra.mxu0 0.0
    %1911 = vmatprep.subr.mxu0 0.0
    %1912 = vmatpush2.msra.mxu0 0.0
    %1913 = vmatprep.subr.mxu0 0.0
    %1914 = vmatpush2.msra.mxu0 0.0
    %1915 = vmatprep.mubr.f32.mxu0 0.0
    %1916 = vmatmul.mubr.f32.gmra.mxu0 %v249
    %v1917 = vpop.f32.mrf.mxu0
    %v1918 = vadd.f32 %v143, %v1917
    %v1919 = vpop.f32.mrf.mxu0
    %v1920 = vadd.f32 %v144, %v1919
    %1921 = vmatprep.mubr.f32.mxu0 0.0
    %1922 = vmatmul.mubr.f32.gmra.mxu0 %v252
    %v1923 = vpop.f32.mrf.mxu0
    %v1924 = vadd.f32 %v147, %v1923
    %v1925 = vpop.f32.mrf.mxu0
    %v1926 = vadd.f32 %v148, %v1925
    %1927 = vmatprep.mubr.f32.mxu0 0.0
    %1928 = vmatmul.mubr.f32.gmra.mxu0 %v255
    %v1929 = vpop.f32.mrf.mxu0
    %v1930 = vadd.f32 %v151, %v1929
    %v1931 = vpop.f32.mrf.mxu0
    %v1932 = vadd.f32 %v152, %v1931
    %1933 = vmatprep.mubr.f32.mxu0 0.0
    %1934 = vmatmul.mubr.f32.gmra.mxu0 %v258
    %v1935 = vpop.f32.mrf.mxu0
    %v1936 = vadd.f32 %v155, %v1935
    %v1937 = vpop.f32.mrf.mxu0
    %v1938 = vadd.f32 %v156, %v1937
    %1939 = vdwg.mxu0
    %1940 = vmatprep.subr.mxu0 0.0
    %1941 = vmatpush1.msra.mxu0 0.0
    %1942 = vmatprep.subr.mxu0 0.0
    %1943 = vmatpush1.msra.mxu0 0.0
    %1944 = vmatprep.subr.mxu0 0.0
    %1945 = vmatpush1.msra.mxu0 0.0
    %1946 = vmatprep.subr.mxu0 0.0
    %1947 = vmatpush1.msra.mxu0 0.0
    %1948 = vmatprep.subr.mxu0 0.0
    %1949 = vmatpush1.msra.mxu0 0.0
    %1950 = vmatprep.subr.mxu0 0.0
    %1951 = vmatpush1.msra.mxu0 0.0
    %1952 = vmatprep.subr.mxu0 0.0
    %1953 = vmatpush1.msra.mxu0 0.0
    %1954 = vmatprep.subr.mxu0 0.0
    %1955 = vmatpush1.msra.mxu0 0.0
    %1956 = vmatprep.subr.mxu0 0.0
    %1957 = vmatpush1.msra.mxu0 0.0
    %1958 = vmatprep.subr.mxu0 0.0
    %1959 = vmatpush1.msra.mxu0 0.0
    %1960 = vmatprep.subr.mxu0 0.0
    %1961 = vmatpush1.msra.mxu0 0.0
    %1962 = vmatprep.subr.mxu0 0.0
    %1963 = vmatpush1.msra.mxu0 0.0
    %1964 = vmatprep.subr.mxu0 %v1850
    %1965 = vmatpush1.msra.mxu0 %v1849
    %1966 = vmatprep.subr.mxu0 %v1846
    %1967 = vmatpush1.msra.mxu0 %v1845
    %1968 = vmatprep.subr.mxu0 %v1842
    %1969 = vmatpush1.msra.mxu0 %v1841
    %1970 = vmatprep.subr.mxu0 %v1838
    %1971 = vmatpush1.msra.mxu0 %v1837
    %1972 = vmatprep.subr.mxu0 0.0
    %1973 = vmatpush2.msra.mxu0 0.0
    %1974 = vmatprep.subr.mxu0 0.0
    %1975 = vmatpush2.msra.mxu0 0.0
    %1976 = vmatprep.subr.mxu0 0.0
    %1977 = vmatpush2.msra.mxu0 0.0
    %1978 = vmatprep.subr.mxu0 0.0
    %1979 = vmatpush2.msra.mxu0 0.0
    %1980 = vmatprep.subr.mxu0 0.0
    %1981 = vmatpush2.msra.mxu0 0.0
    %1982 = vmatprep.subr.mxu0 0.0
    %1983 = vmatpush2.msra.mxu0 0.0
    %1984 = vmatprep.subr.mxu0 0.0
    %1985 = vmatpush2.msra.mxu0 0.0
    %1986 = vmatprep.subr.mxu0 0.0
    %1987 = vmatpush2.msra.mxu0 0.0
    %1988 = vmatprep.subr.mxu0 0.0
    %1989 = vmatpush2.msra.mxu0 0.0
    %1990 = vmatprep.subr.mxu0 0.0
    %1991 = vmatpush2.msra.mxu0 0.0
    %1992 = vmatprep.subr.mxu0 0.0
    %1993 = vmatpush2.msra.mxu0 0.0
    %1994 = vmatprep.subr.mxu0 0.0
    %1995 = vmatpush2.msra.mxu0 0.0
    %1996 = vmatprep.subr.mxu0 0.0
    %1997 = vmatpush2.msra.mxu0 0.0
    %1998 = vmatprep.subr.mxu0 0.0
    %1999 = vmatpush2.msra.mxu0 0.0
    %2000 = vmatprep.subr.mxu0 0.0
    %2001 = vmatpush2.msra.mxu0 0.0
    %2002 = vmatprep.subr.mxu0 0.0
    %2003 = vmatpush2.msra.mxu0 0.0
    %2004 = vmatprep.mubr.f32.mxu0 0.0
    %2005 = vmatmul.mubr.f32.gmra.mxu0 %v249
    %v2006 = vpop.f32.mrf.mxu0
    %v2007 = vadd.f32 %v145, %v2006
    %v2008 = vpop.f32.mrf.mxu0
    %v2009 = vadd.f32 %v146, %v2008
    %2010 = vmatprep.mubr.f32.mxu0 0.0
    %2011 = vmatmul.mubr.f32.gmra.mxu0 %v252
    %v2012 = vpop.f32.mrf.mxu0
    %v2013 = vadd.f32 %v149, %v2012
    %v2014 = vpop.f32.mrf.mxu0
    %v2015 = vadd.f32 %v150, %v2014
    %2016 = vmatprep.mubr.f32.mxu0 0.0
    %2017 = vmatmul.mubr.f32.gmra.mxu0 %v255
    %v2018 = vpop.f32.mrf.mxu0
    %v2019 = vadd.f32 %v153, %v2018
    %v2020 = vpop.f32.mrf.mxu0
    %v2021 = vadd.f32 %v154, %v2020
    %2022 = vmatprep.mubr.f32.mxu0 0.0
    %2023 = vmatmul.mubr.f32.gmra.mxu0 %v258
    %v2024 = vpop.f32.mrf.mxu0
    %v2025 = vadd.f32 %v157, %v2024
    %v2026 = vpop.f32.mrf.mxu0
    %v2027 = vadd.f32 %v158, %v2026
    %2028 = vdwg.mxu0
    %v2029 = vmax.f32 %v1918, 0.0
    %v2030 = vmax.f32 %v1920, 0.0
    %v2031 = vmax.f32 %v2007, 0.0
    %v2032 = vmax.f32 %v2009, 0.0
    %v2033 = vmax.f32 %v1924, 0.0
    %v2034 = vmax.f32 %v1926, 0.0
    %v2035 = vmax.f32 %v2013, 0.0
    %v2036 = vmax.f32 %v2015, 0.0
    %v2037 = vmax.f32 %v1930, 0.0
    %v2038 = vmax.f32 %v1932, 0.0
    %v2039 = vmax.f32 %v2019, 0.0
    %v2040 = vmax.f32 %v2021, 0.0
    %v2041 = vmax.f32 %v1936, 0.0
    %v2042 = vmax.f32 %v1938, 0.0
    %v2043 = vmax.f32 %v2025, 0.0
    %v2044 = vmax.f32 %v2027, 0.0
    %v2045 = vmul.f32 %v159, %v2029
    %v2046 = vmul.f32 %v160, %v2030
    %v2047 = vmul.f32 %v161, %v2031
    %v2048 = vmul.f32 %v162, %v2032
    %v2049 = vmul.f32 %v163, %v2033
    %v2050 = vmul.f32 %v164, %v2034
    %v2051 = vmul.f32 %v165, %v2035
    %v2052 = vmul.f32 %v166, %v2036
    %v2053 = vmul.f32 %v167, %v2037
    %v2054 = vmul.f32 %v168, %v2038
    %v2055 = vmul.f32 %v169, %v2039
    %v2056 = vmul.f32 %v170, %v2040
    %v2057 = vmul.f32 %v171, %v2041
    %v2058 = vmul.f32 %v172, %v2042
    %v2059 = vmul.f32 %v173, %v2043
    %v2060 = vmul.f32 %v174, %v2044
    %v2061 = vadd.f32 %v2045, %v2049
    %v2062 = vadd.f32 %v2061, %v2053
    %v2063 = vadd.f32 %v2062, %v2057
    %v2064 = vrot.slane %v2063, 4
    %v2065 = vadd.f32 %v2063, %v2064
    %v2066 = vrot.slane %v2065, 2
    %v2067 = vadd.f32 %v2065, %v2066
    %v2068 = vrot.slane %v2067, 1
    %v2069 = vadd.f32 %v2067, %v2068
    %v2070 = vadd.f32 %v2046, %v2050
    %v2071 = vadd.f32 %v2070, %v2054
    %v2072 = vadd.f32 %v2071, %v2058
    %v2073 = vrot.slane %v2072, 4
    %v2074 = vadd.f32 %v2072, %v2073
    %v2075 = vrot.slane %v2074, 2
    %v2076 = vadd.f32 %v2074, %v2075
    %v2077 = vrot.slane %v2076, 1
    %v2078 = vadd.f32 %v2076, %v2077
    %v2079 = vadd.f32 %v2047, %v2051
    %v2080 = vadd.f32 %v2079, %v2055
    %v2081 = vadd.f32 %v2080, %v2059
    %v2082 = vrot.slane %v2081, 4
    %v2083 = vadd.f32 %v2081, %v2082
    %v2084 = vrot.slane %v2083, 2
    %v2085 = vadd.f32 %v2083, %v2084
    %v2086 = vrot.slane %v2085, 1
    %v2087 = vadd.f32 %v2085, %v2086
    %v2088 = vadd.f32 %v2048, %v2052
    %v2089 = vadd.f32 %v2088, %v2056
    %v2090 = vadd.f32 %v2089, %v2060
    %v2091 = vrot.slane %v2090, 4
    %v2092 = vadd.f32 %v2090, %v2091
    %v2093 = vrot.slane %v2092, 2
    %v2094 = vadd.f32 %v2092, %v2093
    %v2095 = vrot.slane %v2094, 1
    %v2096 = vadd.f32 %v2094, %v2095
    %v2097 = vadd.f32 %v2069, %v510
    %v2098 = vadd.f32 %v2078, %v514
    %v2099 = vadd.f32 %v2087, %v518
    %v2100 = vadd.f32 %v2096, %v522
    %v2101 = vlaneseq
    %v2102 = vshrl.u32 %v2101, 7
    %v2103 = vsub.s32 6, %v2102
    %v2104 = vrot.slane %v179, %v2103
    %v2105 = vlaneseq
    %v2106 = vshrl.u32 %v2105, 7
    %v2107 = vsub.s32 6, %v2106
    %v2108 = vrot.slane %v180, %v2107
    %v2109 = vlaneseq
    %v2110 = vshrl.u32 %v2109, 7
    %v2111 = vsub.s32 6, %v2110
    %v2112 = vrot.slane %v181, %v2111
    %v2113 = vlaneseq
    %v2114 = vshrl.u32 %v2113, 7
    %v2115 = vsub.s32 6, %v2114
    %v2116 = vrot.slane %v182, %v2115
    %v2117 = vmul.f32 %v2104, %v107
    %v2118 = vmul.f32 %v2108, %v108
    %v2119 = vmul.f32 %v2112, %v109
    %v2120 = vmul.f32 %v2116, %v110
    %v2121 = vmul.f32 %v2104, %v111
    %v2122 = vmul.f32 %v2108, %v112
    %v2123 = vmul.f32 %v2112, %v113
    %v2124 = vmul.f32 %v2116, %v114
    %v2125 = vmul.f32 %v2104, %v115
    %v2126 = vmul.f32 %v2108, %v116
    %v2127 = vmul.f32 %v2112, %v117
    %v2128 = vmul.f32 %v2116, %v118
    %v2129 = vmul.f32 %v2104, %v119
    %v2130 = vmul.f32 %v2108, %v120
    %v2131 = vmul.f32 %v2112, %v121
    %v2132 = vmul.f32 %v2116, %v122
    %v2133 = vadd.f32 %v2117, %v123
    %v2134 = vadd.f32 %v2118, %v124
    %v2135 = vadd.f32 %v2119, %v125
    %v2136 = vadd.f32 %v2120, %v126
    %v2137 = vadd.f32 %v2121, %v127
    %v2138 = vadd.f32 %v2122, %v128
    %v2139 = vadd.f32 %v2123, %v129
    %v2140 = vadd.f32 %v2124, %v130
    %v2141 = vadd.f32 %v2125, %v131
    %v2142 = vadd.f32 %v2126, %v132
    %v2143 = vadd.f32 %v2127, %v133
    %v2144 = vadd.f32 %v2128, %v134
    %v2145 = vadd.f32 %v2129, %v135
    %v2146 = vadd.f32 %v2130, %v136
    %v2147 = vadd.f32 %v2131, %v137
    %v2148 = vadd.f32 %v2132, %v138
    %v2149 = vmax.f32 %v2133, 0.0
    %v2150 = vmax.f32 %v2134, 0.0
    %v2151 = vmax.f32 %v2135, 0.0
    %v2152 = vmax.f32 %v2136, 0.0
    %v2153 = vmax.f32 %v2137, 0.0
    %v2154 = vmax.f32 %v2138, 0.0
    %v2155 = vmax.f32 %v2139, 0.0
    %v2156 = vmax.f32 %v2140, 0.0
    %v2157 = vmax.f32 %v2141, 0.0
    %v2158 = vmax.f32 %v2142, 0.0
    %v2159 = vmax.f32 %v2143, 0.0
    %v2160 = vmax.f32 %v2144, 0.0
    %v2161 = vmax.f32 %v2145, 0.0
    %v2162 = vmax.f32 %v2146, 0.0
    %v2163 = vmax.f32 %v2147, 0.0
    %v2164 = vmax.f32 %v2148, 0.0
    %2165 = vmatprep.subr.mxu0 0.0
    %2166 = vmatpush1.msra.mxu0 0.0
    %2167 = vmatprep.subr.mxu0 0.0
    %2168 = vmatpush1.msra.mxu0 0.0
    %2169 = vmatprep.subr.mxu0 0.0
    %2170 = vmatpush1.msra.mxu0 0.0
    %2171 = vmatprep.subr.mxu0 0.0
    %2172 = vmatpush1.msra.mxu0 0.0
    %2173 = vmatprep.subr.mxu0 0.0
    %2174 = vmatpush1.msra.mxu0 0.0
    %2175 = vmatprep.subr.mxu0 0.0
    %2176 = vmatpush1.msra.mxu0 0.0
    %2177 = vmatprep.subr.mxu0 0.0
    %2178 = vmatpush1.msra.mxu0 0.0
    %2179 = vmatprep.subr.mxu0 0.0
    %2180 = vmatpush1.msra.mxu0 0.0
    %2181 = vmatprep.subr.mxu0 0.0
    %2182 = vmatpush1.msra.mxu0 0.0
    %2183 = vmatprep.subr.mxu0 0.0
    %2184 = vmatpush1.msra.mxu0 0.0
    %2185 = vmatprep.subr.mxu0 0.0
    %2186 = vmatpush1.msra.mxu0 0.0
    %2187 = vmatprep.subr.mxu0 0.0
    %2188 = vmatpush1.msra.mxu0 0.0
    %2189 = vmatprep.subr.mxu0 %v2162
    %2190 = vmatpush1.msra.mxu0 %v2161
    %2191 = vmatprep.subr.mxu0 %v2158
    %2192 = vmatpush1.msra.mxu0 %v2157
    %2193 = vmatprep.subr.mxu0 %v2154
    %2194 = vmatpush1.msra.mxu0 %v2153
    %2195 = vmatprep.subr.mxu0 %v2150
    %2196 = vmatpush1.msra.mxu0 %v2149
    %2197 = vmatprep.subr.mxu0 0.0
    %2198 = vmatpush2.msra.mxu0 0.0
    %2199 = vmatprep.subr.mxu0 0.0
    %2200 = vmatpush2.msra.mxu0 0.0
    %2201 = vmatprep.subr.mxu0 0.0
    %2202 = vmatpush2.msra.mxu0 0.0
    %2203 = vmatprep.subr.mxu0 0.0
    %2204 = vmatpush2.msra.mxu0 0.0
    %2205 = vmatprep.subr.mxu0 0.0
    %2206 = vmatpush2.msra.mxu0 0.0
    %2207 = vmatprep.subr.mxu0 0.0
    %2208 = vmatpush2.msra.mxu0 0.0
    %2209 = vmatprep.subr.mxu0 0.0
    %2210 = vmatpush2.msra.mxu0 0.0
    %2211 = vmatprep.subr.mxu0 0.0
    %2212 = vmatpush2.msra.mxu0 0.0
    %2213 = vmatprep.subr.mxu0 0.0
    %2214 = vmatpush2.msra.mxu0 0.0
    %2215 = vmatprep.subr.mxu0 0.0
    %2216 = vmatpush2.msra.mxu0 0.0
    %2217 = vmatprep.subr.mxu0 0.0
    %2218 = vmatpush2.msra.mxu0 0.0
    %2219 = vmatprep.subr.mxu0 0.0
    %2220 = vmatpush2.msra.mxu0 0.0
    %2221 = vmatprep.subr.mxu0 0.0
    %2222 = vmatpush2.msra.mxu0 0.0
    %2223 = vmatprep.subr.mxu0 0.0
    %2224 = vmatpush2.msra.mxu0 0.0
    %2225 = vmatprep.subr.mxu0 0.0
    %2226 = vmatpush2.msra.mxu0 0.0
    %2227 = vmatprep.subr.mxu0 0.0
    %2228 = vmatpush2.msra.mxu0 0.0
    %2229 = vmatprep.mubr.f32.mxu0 0.0
    %2230 = vmatmul.mubr.f32.gmra.mxu0 %v249
    %v2231 = vpop.f32.mrf.mxu0
    %v2232 = vadd.f32 %v143, %v2231
    %v2233 = vpop.f32.mrf.mxu0
    %v2234 = vadd.f32 %v144, %v2233
    %2235 = vmatprep.mubr.f32.mxu0 0.0
    %2236 = vmatmul.mubr.f32.gmra.mxu0 %v252
    %v2237 = vpop.f32.mrf.mxu0
    %v2238 = vadd.f32 %v147, %v2237
    %v2239 = vpop.f32.mrf.mxu0
    %v2240 = vadd.f32 %v148, %v2239
    %2241 = vmatprep.mubr.f32.mxu0 0.0
    %2242 = vmatmul.mubr.f32.gmra.mxu0 %v255
    %v2243 = vpop.f32.mrf.mxu0
    %v2244 = vadd.f32 %v151, %v2243
    %v2245 = vpop.f32.mrf.mxu0
    %v2246 = vadd.f32 %v152, %v2245
    %2247 = vmatprep.mubr.f32.mxu0 0.0
    %2248 = vmatmul.mubr.f32.gmra.mxu0 %v258
    %v2249 = vpop.f32.mrf.mxu0
    %v2250 = vadd.f32 %v155, %v2249
    %v2251 = vpop.f32.mrf.mxu0
    %v2252 = vadd.f32 %v156, %v2251
    %2253 = vdwg.mxu0
    %2254 = vmatprep.subr.mxu0 0.0
    %2255 = vmatpush1.msra.mxu0 0.0
    %2256 = vmatprep.subr.mxu0 0.0
    %2257 = vmatpush1.msra.mxu0 0.0
    %2258 = vmatprep.subr.mxu0 0.0
    %2259 = vmatpush1.msra.mxu0 0.0
    %2260 = vmatprep.subr.mxu0 0.0
    %2261 = vmatpush1.msra.mxu0 0.0
    %2262 = vmatprep.subr.mxu0 0.0
    %2263 = vmatpush1.msra.mxu0 0.0
    %2264 = vmatprep.subr.mxu0 0.0
    %2265 = vmatpush1.msra.mxu0 0.0
    %2266 = vmatprep.subr.mxu0 0.0
    %2267 = vmatpush1.msra.mxu0 0.0
    %2268 = vmatprep.subr.mxu0 0.0
    %2269 = vmatpush1.msra.mxu0 0.0
    %2270 = vmatprep.subr.mxu0 0.0
    %2271 = vmatpush1.msra.mxu0 0.0
    %2272 = vmatprep.subr.mxu0 0.0
    %2273 = vmatpush1.msra.mxu0 0.0
    %2274 = vmatprep.subr.mxu0 0.0
    %2275 = vmatpush1.msra.mxu0 0.0
    %2276 = vmatprep.subr.mxu0 0.0
    %2277 = vmatpush1.msra.mxu0 0.0
    %2278 = vmatprep.subr.mxu0 %v2164
    %2279 = vmatpush1.msra.mxu0 %v2163
    %2280 = vmatprep.subr.mxu0 %v2160
    %2281 = vmatpush1.msra.mxu0 %v2159
    %2282 = vmatprep.subr.mxu0 %v2156
    %2283 = vmatpush1.msra.mxu0 %v2155
    %2284 = vmatprep.subr.mxu0 %v2152
    %2285 = vmatpush1.msra.mxu0 %v2151
    %2286 = vmatprep.subr.mxu0 0.0
    %2287 = vmatpush2.msra.mxu0 0.0
    %2288 = vmatprep.subr.mxu0 0.0
    %2289 = vmatpush2.msra.mxu0 0.0
    %2290 = vmatprep.subr.mxu0 0.0
    %2291 = vmatpush2.msra.mxu0 0.0
    %2292 = vmatprep.subr.mxu0 0.0
    %2293 = vmatpush2.msra.mxu0 0.0
    %2294 = vmatprep.subr.mxu0 0.0
    %2295 = vmatpush2.msra.mxu0 0.0
    %2296 = vmatprep.subr.mxu0 0.0
    %2297 = vmatpush2.msra.mxu0 0.0
    %2298 = vmatprep.subr.mxu0 0.0
    %2299 = vmatpush2.msra.mxu0 0.0
    %2300 = vmatprep.subr.mxu0 0.0
    %2301 = vmatpush2.msra.mxu0 0.0
    %2302 = vmatprep.subr.mxu0 0.0
    %2303 = vmatpush2.msra.mxu0 0.0
    %2304 = vmatprep.subr.mxu0 0.0
    %2305 = vmatpush2.msra.mxu0 0.0
    %2306 = vmatprep.subr.mxu0 0.0
    %2307 = vmatpush2.msra.mxu0 0.0
    %2308 = vmatprep.subr.mxu0 0.0
    %2309 = vmatpush2.msra.mxu0 0.0
    %2310 = vmatprep.subr.mxu0 0.0
    %2311 = vmatpush2.msra.mxu0 0.0
    %2312 = vmatprep.subr.mxu0 0.0
    %2313 = vmatpush2.msra.mxu0 0.0
    %2314 = vmatprep.subr.mxu0 0.0
    %2315 = vmatpush2.msra.mxu0 0.0
    %2316 = vmatprep.subr.mxu0 0.0
    %2317 = vmatpush2.msra.mxu0 0.0
    %2318 = vmatprep.mubr.f32.mxu0 0.0
    %2319 = vmatmul.mubr.f32.gmra.mxu0 %v249
    %v2320 = vpop.f32.mrf.mxu0
    %v2321 = vadd.f32 %v145, %v2320
    %v2322 = vpop.f32.mrf.mxu0
    %v2323 = vadd.f32 %v146, %v2322
    %2324 = vmatprep.mubr.f32.mxu0 0.0
    %2325 = vmatmul.mubr.f32.gmra.mxu0 %v252
    %v2326 = vpop.f32.mrf.mxu0
    %v2327 = vadd.f32 %v149, %v2326
    %v2328 = vpop.f32.mrf.mxu0
    %v2329 = vadd.f32 %v150, %v2328
    %2330 = vmatprep.mubr.f32.mxu0 0.0
    %2331 = vmatmul.mubr.f32.gmra.mxu0 %v255
    %v2332 = vpop.f32.mrf.mxu0
    %v2333 = vadd.f32 %v153, %v2332
    %v2334 = vpop.f32.mrf.mxu0
    %v2335 = vadd.f32 %v154, %v2334
    %2336 = vmatprep.mubr.f32.mxu0 0.0
    %2337 = vmatmul.mubr.f32.gmra.mxu0 %v258
    %v2338 = vpop.f32.mrf.mxu0
    %v2339 = vadd.f32 %v157, %v2338
    %v2340 = vpop.f32.mrf.mxu0
    %v2341 = vadd.f32 %v158, %v2340
    %2342 = vdwg.mxu0
    %v2343 = vmax.f32 %v2232, 0.0
    %v2344 = vmax.f32 %v2234, 0.0
    %v2345 = vmax.f32 %v2321, 0.0
    %v2346 = vmax.f32 %v2323, 0.0
    %v2347 = vmax.f32 %v2238, 0.0
    %v2348 = vmax.f32 %v2240, 0.0
    %v2349 = vmax.f32 %v2327, 0.0
    %v2350 = vmax.f32 %v2329, 0.0
    %v2351 = vmax.f32 %v2244, 0.0
    %v2352 = vmax.f32 %v2246, 0.0
    %v2353 = vmax.f32 %v2333, 0.0
    %v2354 = vmax.f32 %v2335, 0.0
    %v2355 = vmax.f32 %v2250, 0.0
    %v2356 = vmax.f32 %v2252, 0.0
    %v2357 = vmax.f32 %v2339, 0.0
    %v2358 = vmax.f32 %v2341, 0.0
    %v2359 = vmul.f32 %v159, %v2343
    %v2360 = vmul.f32 %v160, %v2344
    %v2361 = vmul.f32 %v161, %v2345
    %v2362 = vmul.f32 %v162, %v2346
    %v2363 = vmul.f32 %v163, %v2347
    %v2364 = vmul.f32 %v164, %v2348
    %v2365 = vmul.f32 %v165, %v2349
    %v2366 = vmul.f32 %v166, %v2350
    %v2367 = vmul.f32 %v167, %v2351
    %v2368 = vmul.f32 %v168, %v2352
    %v2369 = vmul.f32 %v169, %v2353
    %v2370 = vmul.f32 %v170, %v2354
    %v2371 = vmul.f32 %v171, %v2355
    %v2372 = vmul.f32 %v172, %v2356
    %v2373 = vmul.f32 %v173, %v2357
    %v2374 = vmul.f32 %v174, %v2358
    %v2375 = vadd.f32 %v2359, %v2363
    %v2376 = vadd.f32 %v2375, %v2367
    %v2377 = vadd.f32 %v2376, %v2371
    %v2378 = vrot.slane %v2377, 4
    %v2379 = vadd.f32 %v2377, %v2378
    %v2380 = vrot.slane %v2379, 2
    %v2381 = vadd.f32 %v2379, %v2380
    %v2382 = vrot.slane %v2381, 1
    %v2383 = vadd.f32 %v2381, %v2382
    %v2384 = vadd.f32 %v2360, %v2364
    %v2385 = vadd.f32 %v2384, %v2368
    %v2386 = vadd.f32 %v2385, %v2372
    %v2387 = vrot.slane %v2386, 4
    %v2388 = vadd.f32 %v2386, %v2387
    %v2389 = vrot.slane %v2388, 2
    %v2390 = vadd.f32 %v2388, %v2389
    %v2391 = vrot.slane %v2390, 1
    %v2392 = vadd.f32 %v2390, %v2391
    %v2393 = vadd.f32 %v2361, %v2365
    %v2394 = vadd.f32 %v2393, %v2369
    %v2395 = vadd.f32 %v2394, %v2373
    %v2396 = vrot.slane %v2395, 4
    %v2397 = vadd.f32 %v2395, %v2396
    %v2398 = vrot.slane %v2397, 2
    %v2399 = vadd.f32 %v2397, %v2398
    %v2400 = vrot.slane %v2399, 1
    %v2401 = vadd.f32 %v2399, %v2400
    %v2402 = vadd.f32 %v2362, %v2366
    %v2403 = vadd.f32 %v2402, %v2370
    %v2404 = vadd.f32 %v2403, %v2374
    %v2405 = vrot.slane %v2404, 4
    %v2406 = vadd.f32 %v2404, %v2405
    %v2407 = vrot.slane %v2406, 2
    %v2408 = vadd.f32 %v2406, %v2407
    %v2409 = vrot.slane %v2408, 1
    %v2410 = vadd.f32 %v2408, %v2409
    %v2411 = vadd.f32 %v2383, %v510
    %v2412 = vadd.f32 %v2392, %v514
    %v2413 = vadd.f32 %v2401, %v518
    %v2414 = vadd.f32 %v2410, %v522
    %v2415 = vlaneseq
    %v2416 = vshrl.u32 %v2415, 7
    %v2417 = vsub.s32 7, %v2416
    %v2418 = vrot.slane %v179, %v2417
    %v2419 = vlaneseq
    %v2420 = vshrl.u32 %v2419, 7
    %v2421 = vsub.s32 7, %v2420
    %v2422 = vrot.slane %v180, %v2421
    %v2423 = vlaneseq
    %v2424 = vshrl.u32 %v2423, 7
    %v2425 = vsub.s32 7, %v2424
    %v2426 = vrot.slane %v181, %v2425
    %v2427 = vlaneseq
    %v2428 = vshrl.u32 %v2427, 7
    %v2429 = vsub.s32 7, %v2428
    %v2430 = vrot.slane %v182, %v2429
    %v2431 = vmul.f32 %v2418, %v107
    %v2432 = vmul.f32 %v2422, %v108
    %v2433 = vmul.f32 %v2426, %v109
    %v2434 = vmul.f32 %v2430, %v110
    %v2435 = vmul.f32 %v2418, %v111
    %v2436 = vmul.f32 %v2422, %v112
    %v2437 = vmul.f32 %v2426, %v113
    %v2438 = vmul.f32 %v2430, %v114
    %v2439 = vmul.f32 %v2418, %v115
    %v2440 = vmul.f32 %v2422, %v116
    %v2441 = vmul.f32 %v2426, %v117
    %v2442 = vmul.f32 %v2430, %v118
    %v2443 = vmul.f32 %v2418, %v119
    %v2444 = vmul.f32 %v2422, %v120
    %v2445 = vmul.f32 %v2426, %v121
    %v2446 = vmul.f32 %v2430, %v122
    %v2447 = vadd.f32 %v2431, %v123
    %v2448 = vadd.f32 %v2432, %v124
    %v2449 = vadd.f32 %v2433, %v125
    %v2450 = vadd.f32 %v2434, %v126
    %v2451 = vadd.f32 %v2435, %v127
    %v2452 = vadd.f32 %v2436, %v128
    %v2453 = vadd.f32 %v2437, %v129
    %v2454 = vadd.f32 %v2438, %v130
    %v2455 = vadd.f32 %v2439, %v131
    %v2456 = vadd.f32 %v2440, %v132
    %v2457 = vadd.f32 %v2441, %v133
    %v2458 = vadd.f32 %v2442, %v134
    %v2459 = vadd.f32 %v2443, %v135
    %v2460 = vadd.f32 %v2444, %v136
    %v2461 = vadd.f32 %v2445, %v137
    %v2462 = vadd.f32 %v2446, %v138
    %v2463 = vmax.f32 %v2447, 0.0
    %v2464 = vmax.f32 %v2448, 0.0
    %v2465 = vmax.f32 %v2449, 0.0
    %v2466 = vmax.f32 %v2450, 0.0
    %v2467 = vmax.f32 %v2451, 0.0
    %v2468 = vmax.f32 %v2452, 0.0
    %v2469 = vmax.f32 %v2453, 0.0
    %v2470 = vmax.f32 %v2454, 0.0
    %v2471 = vmax.f32 %v2455, 0.0
    %v2472 = vmax.f32 %v2456, 0.0
    %v2473 = vmax.f32 %v2457, 0.0
    %v2474 = vmax.f32 %v2458, 0.0
    %v2475 = vmax.f32 %v2459, 0.0
    %v2476 = vmax.f32 %v2460, 0.0
    %v2477 = vmax.f32 %v2461, 0.0
    %v2478 = vmax.f32 %v2462, 0.0
    %2479 = vmatprep.subr.mxu0 0.0
    %2480 = vmatpush1.msra.mxu0 0.0
    %2481 = vmatprep.subr.mxu0 0.0
    %2482 = vmatpush1.msra.mxu0 0.0
    %2483 = vmatprep.subr.mxu0 0.0
    %2484 = vmatpush1.msra.mxu0 0.0
    %2485 = vmatprep.subr.mxu0 0.0
    %2486 = vmatpush1.msra.mxu0 0.0
    %2487 = vmatprep.subr.mxu0 0.0
    %2488 = vmatpush1.msra.mxu0 0.0
    %2489 = vmatprep.subr.mxu0 0.0
    %2490 = vmatpush1.msra.mxu0 0.0
    %2491 = vmatprep.subr.mxu0 0.0
    %2492 = vmatpush1.msra.mxu0 0.0
    %2493 = vmatprep.subr.mxu0 0.0
    %2494 = vmatpush1.msra.mxu0 0.0
    %2495 = vmatprep.subr.mxu0 0.0
    %2496 = vmatpush1.msra.mxu0 0.0
    %2497 = vmatprep.subr.mxu0 0.0
    %2498 = vmatpush1.msra.mxu0 0.0
    %2499 = vmatprep.subr.mxu0 0.0
    %2500 = vmatpush1.msra.mxu0 0.0
    %2501 = vmatprep.subr.mxu0 0.0
    %2502 = vmatpush1.msra.mxu0 0.0
    %2503 = vmatprep.subr.mxu0 %v2476
    %2504 = vmatpush1.msra.mxu0 %v2475
    %2505 = vmatprep.subr.mxu0 %v2472
    %2506 = vmatpush1.msra.mxu0 %v2471
    %2507 = vmatprep.subr.mxu0 %v2468
    %2508 = vmatpush1.msra.mxu0 %v2467
    %2509 = vmatprep.subr.mxu0 %v2464
    %2510 = vmatpush1.msra.mxu0 %v2463
    %2511 = vmatprep.subr.mxu0 0.0
    %2512 = vmatpush2.msra.mxu0 0.0
    %2513 = vmatprep.subr.mxu0 0.0
    %2514 = vmatpush2.msra.mxu0 0.0
    %2515 = vmatprep.subr.mxu0 0.0
    %2516 = vmatpush2.msra.mxu0 0.0
    %2517 = vmatprep.subr.mxu0 0.0
    %2518 = vmatpush2.msra.mxu0 0.0
    %2519 = vmatprep.subr.mxu0 0.0
    %2520 = vmatpush2.msra.mxu0 0.0
    %2521 = vmatprep.subr.mxu0 0.0
    %2522 = vmatpush2.msra.mxu0 0.0
    %2523 = vmatprep.subr.mxu0 0.0
    %2524 = vmatpush2.msra.mxu0 0.0
    %2525 = vmatprep.subr.mxu0 0.0
    %2526 = vmatpush2.msra.mxu0 0.0
    %2527 = vmatprep.subr.mxu0 0.0
    %2528 = vmatpush2.msra.mxu0 0.0
    %2529 = vmatprep.subr.mxu0 0.0
    %2530 = vmatpush2.msra.mxu0 0.0
    %2531 = vmatprep.subr.mxu0 0.0
    %2532 = vmatpush2.msra.mxu0 0.0
    %2533 = vmatprep.subr.mxu0 0.0
    %2534 = vmatpush2.msra.mxu0 0.0
    %2535 = vmatprep.subr.mxu0 0.0
    %2536 = vmatpush2.msra.mxu0 0.0
    %2537 = vmatprep.subr.mxu0 0.0
    %2538 = vmatpush2.msra.mxu0 0.0
    %2539 = vmatprep.subr.mxu0 0.0
    %2540 = vmatpush2.msra.mxu0 0.0
    %2541 = vmatprep.subr.mxu0 0.0
    %2542 = vmatpush2.msra.mxu0 0.0
    %2543 = vmatprep.mubr.f32.mxu0 0.0
    %2544 = vmatmul.mubr.f32.gmra.mxu0 %v249
    %v2545 = vpop.f32.mrf.mxu0
    %v2546 = vadd.f32 %v143, %v2545
    %v2547 = vpop.f32.mrf.mxu0
    %v2548 = vadd.f32 %v144, %v2547
    %2549 = vmatprep.mubr.f32.mxu0 0.0
    %2550 = vmatmul.mubr.f32.gmra.mxu0 %v252
    %v2551 = vpop.f32.mrf.mxu0
    %v2552 = vadd.f32 %v147, %v2551
    %v2553 = vpop.f32.mrf.mxu0
    %v2554 = vadd.f32 %v148, %v2553
    %2555 = vmatprep.mubr.f32.mxu0 0.0
    %2556 = vmatmul.mubr.f32.gmra.mxu0 %v255
    %v2557 = vpop.f32.mrf.mxu0
    %v2558 = vadd.f32 %v151, %v2557
    %v2559 = vpop.f32.mrf.mxu0
    %v2560 = vadd.f32 %v152, %v2559
    %2561 = vmatprep.mubr.f32.mxu0 0.0
    %2562 = vmatmul.mubr.f32.gmra.mxu0 %v258
    %v2563 = vpop.f32.mrf.mxu0
    %v2564 = vadd.f32 %v155, %v2563
    %v2565 = vpop.f32.mrf.mxu0
    %v2566 = vadd.f32 %v156, %v2565
    %2567 = vdwg.mxu0
    %2568 = vmatprep.subr.mxu0 0.0
    %2569 = vmatpush1.msra.mxu0 0.0
    %2570 = vmatprep.subr.mxu0 0.0
    %2571 = vmatpush1.msra.mxu0 0.0
    %2572 = vmatprep.subr.mxu0 0.0
    %2573 = vmatpush1.msra.mxu0 0.0
    %2574 = vmatprep.subr.mxu0 0.0
    %2575 = vmatpush1.msra.mxu0 0.0
    %2576 = vmatprep.subr.mxu0 0.0
    %2577 = vmatpush1.msra.mxu0 0.0
    %2578 = vmatprep.subr.mxu0 0.0
    %2579 = vmatpush1.msra.mxu0 0.0
    %2580 = vmatprep.subr.mxu0 0.0
    %2581 = vmatpush1.msra.mxu0 0.0
    %2582 = vmatprep.subr.mxu0 0.0
    %2583 = vmatpush1.msra.mxu0 0.0
    %2584 = vmatprep.subr.mxu0 0.0
    %2585 = vmatpush1.msra.mxu0 0.0
    %2586 = vmatprep.subr.mxu0 0.0
    %2587 = vmatpush1.msra.mxu0 0.0
    %2588 = vmatprep.subr.mxu0 0.0
    %2589 = vmatpush1.msra.mxu0 0.0
    %2590 = vmatprep.subr.mxu0 0.0
    %2591 = vmatpush1.msra.mxu0 0.0
    %2592 = vmatprep.subr.mxu0 %v2478
    %2593 = vmatpush1.msra.mxu0 %v2477
    %2594 = vmatprep.subr.mxu0 %v2474
    %2595 = vmatpush1.msra.mxu0 %v2473
    %2596 = vmatprep.subr.mxu0 %v2470
    %2597 = vmatpush1.msra.mxu0 %v2469
    %2598 = vmatprep.subr.mxu0 %v2466
    %2599 = vmatpush1.msra.mxu0 %v2465
    %2600 = vmatprep.subr.mxu0 0.0
    %2601 = vmatpush2.msra.mxu0 0.0
    %2602 = vmatprep.subr.mxu0 0.0
    %2603 = vmatpush2.msra.mxu0 0.0
    %2604 = vmatprep.subr.mxu0 0.0
    %2605 = vmatpush2.msra.mxu0 0.0
    %2606 = vmatprep.subr.mxu0 0.0
    %2607 = vmatpush2.msra.mxu0 0.0
    %2608 = vmatprep.subr.mxu0 0.0
    %2609 = vmatpush2.msra.mxu0 0.0
    %2610 = vmatprep.subr.mxu0 0.0
    %2611 = vmatpush2.msra.mxu0 0.0
    %2612 = vmatprep.subr.mxu0 0.0
    %2613 = vmatpush2.msra.mxu0 0.0
    %2614 = vmatprep.subr.mxu0 0.0
    %2615 = vmatpush2.msra.mxu0 0.0
    %2616 = vmatprep.subr.mxu0 0.0
    %2617 = vmatpush2.msra.mxu0 0.0
    %2618 = vmatprep.subr.mxu0 0.0
    %2619 = vmatpush2.msra.mxu0 0.0
    %2620 = vmatprep.subr.mxu0 0.0
    %2621 = vmatpush2.msra.mxu0 0.0
    %2622 = vmatprep.subr.mxu0 0.0
    %2623 = vmatpush2.msra.mxu0 0.0
    %2624 = vmatprep.subr.mxu0 0.0
    %2625 = vmatpush2.msra.mxu0 0.0
    %2626 = vmatprep.subr.mxu0 0.0
    %2627 = vmatpush2.msra.mxu0 0.0
    %2628 = vmatprep.subr.mxu0 0.0
    %2629 = vmatpush2.msra.mxu0 0.0
    %2630 = vmatprep.subr.mxu0 0.0
    %2631 = vmatpush2.msra.mxu0 0.0
    %2632 = vmatprep.mubr.f32.mxu0 0.0
    %2633 = vmatmul.mubr.f32.gmra.mxu0 %v249
    %v2634 = vpop.f32.mrf.mxu0
    %v2635 = vadd.f32 %v145, %v2634
    %v2636 = vpop.f32.mrf.mxu0
    %v2637 = vadd.f32 %v146, %v2636
    %2638 = vmatprep.mubr.f32.mxu0 0.0
    %2639 = vmatmul.mubr.f32.gmra.mxu0 %v252
    %v2640 = vpop.f32.mrf.mxu0
    %v2641 = vadd.f32 %v149, %v2640
    %v2642 = vpop.f32.mrf.mxu0
    %v2643 = vadd.f32 %v150, %v2642
    %2644 = vmatprep.mubr.f32.mxu0 0.0
    %2645 = vmatmul.mubr.f32.gmra.mxu0 %v255
    %v2646 = vpop.f32.mrf.mxu0
    %v2647 = vadd.f32 %v153, %v2646
    %v2648 = vpop.f32.mrf.mxu0
    %v2649 = vadd.f32 %v154, %v2648
    %2650 = vmatprep.mubr.f32.mxu0 0.0
    %2651 = vmatmul.mubr.f32.gmra.mxu0 %v258
    %v2652 = vpop.f32.mrf.mxu0
    %v2653 = vadd.f32 %v157, %v2652
    %v2654 = vpop.f32.mrf.mxu0
    %v2655 = vadd.f32 %v158, %v2654
    %2656 = vdwg.mxu0
    %v2657 = vmax.f32 %v2546, 0.0
    %v2658 = vmax.f32 %v2548, 0.0
    %v2659 = vmax.f32 %v2635, 0.0
    %v2660 = vmax.f32 %v2637, 0.0
    %v2661 = vmax.f32 %v2552, 0.0
    %v2662 = vmax.f32 %v2554, 0.0
    %v2663 = vmax.f32 %v2641, 0.0
    %v2664 = vmax.f32 %v2643, 0.0
    %v2665 = vmax.f32 %v2558, 0.0
    %v2666 = vmax.f32 %v2560, 0.0
    %v2667 = vmax.f32 %v2647, 0.0
    %v2668 = vmax.f32 %v2649, 0.0
    %v2669 = vmax.f32 %v2564, 0.0
    %v2670 = vmax.f32 %v2566, 0.0
    %v2671 = vmax.f32 %v2653, 0.0
    %v2672 = vmax.f32 %v2655, 0.0
    %v2673 = vmul.f32 %v159, %v2657
    %v2674 = vmul.f32 %v160, %v2658
    %v2675 = vmul.f32 %v161, %v2659
    %v2676 = vmul.f32 %v162, %v2660
    %v2677 = vmul.f32 %v163, %v2661
    %v2678 = vmul.f32 %v164, %v2662
    %v2679 = vmul.f32 %v165, %v2663
    %v2680 = vmul.f32 %v166, %v2664
    %v2681 = vmul.f32 %v167, %v2665
    %v2682 = vmul.f32 %v168, %v2666
    %v2683 = vmul.f32 %v169, %v2667
    %v2684 = vmul.f32 %v170, %v2668
    %v2685 = vmul.f32 %v171, %v2669
    %v2686 = vmul.f32 %v172, %v2670
    %v2687 = vmul.f32 %v173, %v2671
    %v2688 = vmul.f32 %v174, %v2672
    %v2689 = vadd.f32 %v2673, %v2677
    %v2690 = vadd.f32 %v2689, %v2681
    %v2691 = vadd.f32 %v2690, %v2685
    %v2692 = vrot.slane %v2691, 4
    %v2693 = vadd.f32 %v2691, %v2692
    %v2694 = vrot.slane %v2693, 2
    %v2695 = vadd.f32 %v2693, %v2694
    %v2696 = vrot.slane %v2695, 1
    %v2697 = vadd.f32 %v2695, %v2696
    %v2698 = vadd.f32 %v2674, %v2678
    %v2699 = vadd.f32 %v2698, %v2682
    %v2700 = vadd.f32 %v2699, %v2686
    %v2701 = vrot.slane %v2700, 4
    %v2702 = vadd.f32 %v2700, %v2701
    %v2703 = vrot.slane %v2702, 2
    %v2704 = vadd.f32 %v2702, %v2703
    %v2705 = vrot.slane %v2704, 1
    %v2706 = vadd.f32 %v2704, %v2705
    %v2707 = vadd.f32 %v2675, %v2679
    %v2708 = vadd.f32 %v2707, %v2683
    %v2709 = vadd.f32 %v2708, %v2687
    %v2710 = vrot.slane %v2709, 4
    %v2711 = vadd.f32 %v2709, %v2710
    %v2712 = vrot.slane %v2711, 2
    %v2713 = vadd.f32 %v2711, %v2712
    %v2714 = vrot.slane %v2713, 1
    %v2715 = vadd.f32 %v2713, %v2714
    %v2716 = vadd.f32 %v2676, %v2680
    %v2717 = vadd.f32 %v2716, %v2684
    %v2718 = vadd.f32 %v2717, %v2688
    %v2719 = vrot.slane %v2718, 4
    %v2720 = vadd.f32 %v2718, %v2719
    %v2721 = vrot.slane %v2720, 2
    %v2722 = vadd.f32 %v2720, %v2721
    %v2723 = vrot.slane %v2722, 1
    %v2724 = vadd.f32 %v2722, %v2723
    %v2725 = vadd.f32 %v2697, %v510
    %v2726 = vadd.f32 %v2706, %v514
    %v2727 = vadd.f32 %v2715, %v518
    %v2728 = vadd.f32 %v2724, %v522
    %v2733 = vrot.slane %v841, 7
    %v2734 = vrot.slane %v842, 7
    %v2735 = vrot.slane %v843, 7
    %v2736 = vrot.slane %v844, 7
    %v2745 = vrot.slane %v1155, 6
    %v2746 = vrot.slane %v1156, 6
    %v2747 = vrot.slane %v1157, 6
    %v2748 = vrot.slane %v1158, 6
    %v2757 = vrot.slane %v1469, 5
    %v2758 = vrot.slane %v1470, 5
    %v2759 = vrot.slane %v1471, 5
    %v2760 = vrot.slane %v1472, 5
    %v2769 = vrot.slane %v1783, 4
    %v2770 = vrot.slane %v1784, 4
    %v2771 = vrot.slane %v1785, 4
    %v2772 = vrot.slane %v1786, 4
    %v2781 = vrot.slane %v2097, 3
    %v2782 = vrot.slane %v2098, 3
    %v2783 = vrot.slane %v2099, 3
    %v2784 = vrot.slane %v2100, 3
    %v2793 = vrot.slane %v2411, 2
    %v2794 = vrot.slane %v2412, 2
    %v2795 = vrot.slane %v2413, 2
    %v2796 = vrot.slane %v2414, 2
    %v2805 = vrot.slane %v2725, 1
    %v2806 = vrot.slane %v2726, 1
    %v2807 = vrot.slane %v2727, 1
    %v2808 = vrot.slane %v2728, 1
    %vm2813 = vcmask 1040384
    %v2814 = vsel %vm2813, %v527, %v2733
    %v2815 = vsel %vm2813, %v528, %v2734
    %v2816 = vsel %vm2813, %v529, %v2735
    %v2817 = vsel %vm2813, %v530, %v2736
    %vm2818 = vcmask 1041408
    %v2819 = vsel %vm2818, %v2814, %v2745
    %v2820 = vsel %vm2818, %v2815, %v2746
    %v2821 = vsel %vm2818, %v2816, %v2747
    %v2822 = vsel %vm2818, %v2817, %v2748
    %vm2823 = vcmask 1042432
    %v2824 = vsel %vm2823, %v2819, %v2757
    %v2825 = vsel %vm2823, %v2820, %v2758
    %v2826 = vsel %vm2823, %v2821, %v2759
    %v2827 = vsel %vm2823, %v2822, %v2760
    %vm2828 = vcmask 1043456
    %v2829 = vsel %vm2828, %v2824, %v2769
    %v2830 = vsel %vm2828, %v2825, %v2770
    %v2831 = vsel %vm2828, %v2826, %v2771
    %v2832 = vsel %vm2828, %v2827, %v2772
    %vm2833 = vcmask 1044480
    %v2834 = vsel %vm2833, %v2829, %v2781
    %v2835 = vsel %vm2833, %v2830, %v2782
    %v2836 = vsel %vm2833, %v2831, %v2783
    %v2837 = vsel %vm2833, %v2832, %v2784
    %vm2838 = vcmask 1045504
    %v2839 = vsel %vm2838, %v2834, %v2793
    %v2840 = vsel %vm2838, %v2835, %v2794
    %v2841 = vsel %vm2838, %v2836, %v2795
    %v2842 = vsel %vm2838, %v2837, %v2796
    %vm2843 = vcmask 1046528
    %v2844 = vsel %vm2843, %v2839, %v2805
    %v2845 = vsel %vm2843, %v2840, %v2806
    %v2846 = vsel %vm2843, %v2841, %v2807
    %v2847 = vsel %vm2843, %v2842, %v2808
    %s2848 = smul.addr %s176, 8
    %s2849 = scalar_lea.vmem [#allocation13], %s2848
    %2850 = vst [vmem:[%s2849] sm:$0xff] %v2844
    %2851 = vst [vmem:[%s2849 + $0x8] sm:$0xff] %v2845
    %2852 = vst [vmem:[%s2849 + $0x10] sm:$0xff] %v2846
    %2853 = vst [vmem:[%s2849 + $0x18] sm:$0xff] %v2847
    // Predicated region
    $region54: #{tpu_custom_call.1} parent=1 // pred_check
      _
    $region55: #{tpu_custom_call.1} parent=1 // pred_check_branch
      %2855 = sbr.rel (0) target = $region57
    $region56: #{tpu_custom_call.1} parent=1 // pred_region
      %s2857 = ssub.s32 512, 512
      %2858 = vsyncadd [#allocation4], %s2857
      %s2860 = sshll.u32 [#allocation13], 4
      %s2861 = int_to_ptr.vmem [resolvable:$true] %s2860
      %2863 = dma.vmem_to_hbm [thread:$0]  %s2861, 512, %s7, [#allocation4]
    $region57: #{tpu_custom_call.1} parent=1 // pred_fallthru
      _
    // Predicated region
    $region58: #{tpu_custom_call.1} parent=1 // pred_check
      _
    $region59: #{tpu_custom_call.1} parent=1 // pred_check_branch
      %2865 = sbr.rel (0) target = $region61
    $region60: #{tpu_custom_call.1} parent=1 // pred_region
      %2866 = dma.done [#allocation4], 512
    $region61: #{tpu_custom_call.1} parent=1 // pred_fallthru
      _
    %2867 = vsyncpa [#allocation3], 1
    %2868 = vsyncpa [#allocation6], 1
    %2869 = vsyncpa [#allocation9], 1
    %2870 = vsyncpa [#allocation12], 1
    %2871 = vsyncpa [#allocation4], 1

</llo_original>
